<compile_context>
chip_gen: v6e
topology: v6e:2x2x1
jax: 0.10.0
libtpu: 0.0.40
codegen_flags: <defaults>
</compile_context>

<pallas_src>
import jax
import jax.numpy as jnp
from jax.experimental import pallas as pl
from jax.experimental.pallas import tpu as pltpu

EPS = 1e-6
FF_SIZE = 1024   # opt['fusion']['mca_FF_SIZE']
N_SGA = 10       # 5 live Fusion_modal blocks x 2 SGA blocks each
N_SLOTS = 8      # activation scratch slots

# Activation slots: 0=cell 1=fp1 2=fp2 3=a2-temp 4=fp1_cell 5=ff 6=fpfp 7=ff2
# Routing row per SGA block: [x_slot, y_slot, out_slot, add_prev(0/1)]
#   even block:  out = SGA(x, y)                       (a2 of a Fusion_modal)
#   odd  block:  out = y + SGA(x, y)  (= a2 + b2, the Fusion_modal result)
ROUTE_TABLE = [
    [0, 1, 3, 0],   # fusion_fp1cell  SGA_1 : a2 = SGA(cell, fp1)
    [1, 3, 4, 1],   # fusion_fp1cell  SGA_2 : fp1_cell = a2 + SGA(fp1, a2)
    [4, 2, 3, 0],   # fusion_final1   SGA_1
    [2, 3, 5, 1],   # fusion_final1   SGA_2 : ff
    [1, 2, 3, 0],   # fusion_fpfp     SGA_1
    [2, 3, 6, 1],   # fusion_fpfp     SGA_2 : fpfp
    [6, 0, 3, 0],   # fusion_final2   SGA_1
    [0, 3, 7, 1],   # fusion_final2   SGA_2 : ff2
    [5, 7, 3, 0],   # fusion_final3   SGA_1
    [7, 3, 7, 1],   # fusion_final3   SGA_2 : final output
]


# ----------------------------- fused kernel -----------------------------------

def hifusion_kernel(route_ref,                       # SMEM (N_SGA, 4) int32
                    cell_ref, fp1_ref, fp2_ref,      # (B, D) f32, resident
                    watt1_ref, watt2_ref,            # (1, D, D)  bf16 per block
                    f1w_ref, f2w_ref,                # (1, D, FF)/(1, FF, D) bf16
                    vecd_ref, vecf_ref,              # (1, 9, D)/(1, 1, FF) f32
                    out_ref,                         # (B, D) f32
                    act_ref):                        # VMEM (N_SLOTS, B, D) f32
    i = pl.program_id(0)

    # Prime the activation slots with the three input features once.
    @pl.when(i == 0)
    def _init():
        act_ref[0] = cell_ref[...]
        act_ref[1] = fp1_ref[...]
        act_ref[2] = fp2_ref[...]

    x_slot = route_ref[i, 0]
    y_slot = route_ref[i, 1]
    o_slot = route_ref[i, 2]
    add_prev = route_ref[i, 3]

    x = act_ref[x_slot]
    y = act_ref[y_slot]

    inv_d = 1.0 / x.shape[-1]

    def ln(v, g, b):
        # single-pass: both reductions independent -> back-to-back on the XLU
        s1 = jnp.sum(v, axis=-1, keepdims=True)
        s2 = jnp.sum(v * v, axis=-1, keepdims=True)
        mean = s1 * inv_d
        var = s2 * inv_d - mean * mean
        return (v - mean) * jax.lax.rsqrt(var + EPS) * g + b

    vd = vecd_ref[0]                                  # (9, D) f32
    b_att1, b_att2, f2b = vd[0:1, :], vd[1:2, :], vd[2:3, :]
    g1, bt1 = vd[3:4, :], vd[4:5, :]
    g2, bt2 = vd[5:6, :], vd[6:7, :]
    g3, bt3 = vd[7:8, :], vd[8:9, :]
    f1b = vecf_ref[0]                                 # (1, FF) f32

    # self-attention branch (seq_len=1 -> folded single matmul)
    a1 = jnp.dot(x.astype(jnp.bfloat16), watt1_ref[0],
                 preferred_element_type=jnp.float32) + b_att1
    x = ln(x + a1, g1, bt1)

    # guided (cross) attention branch: value comes from y
    a2 = jnp.dot(y.astype(jnp.bfloat16), watt2_ref[0],
                 preferred_element_type=jnp.float32) + b_att2
    x = ln(x + a2, g2, bt2)

    # FFN: Linear(D->FF) -> ReLU -> Linear(FF->D); hidden kept in bf16
    h = jnp.maximum(
        jnp.dot(x.astype(jnp.bfloat16), f1w_ref[0],
                preferred_element_type=jnp.float32) + f1b,
        0.0).astype(jnp.bfloat16)
    f = jnp.dot(h, f2w_ref[0], preferred_element_type=jnp.float32) + f2b
    res = ln(x + f, g3, bt3)

    # odd blocks accumulate the Fusion_modal result: out = a2 + b2 (= y + res)
    final = res + y * add_prev.astype(jnp.float32)
    act_ref[o_slot] = final

    @pl.when(i == pl.num_programs(0) - 1)
    def _finalize():
        out_ref[...] = final


def hifusion_apply(packed, cell_feature, fp1_feature, fp2_feature):
    B, D = cell_feature.shape
    route = jnp.asarray(ROUTE_TABLE, dtype=jnp.int32)

    args = (cell_feature, fp1_feature, fp2_feature,
            packed["watt1"], packed["watt2"], packed["f1w"], packed["f2w"],
            packed["vecd"], packed["vecf"])

    flops = 2 * B * N_SGA * (2 * D * D + 2 * D * FF_SIZE)
    weight_bytes = sum(int(a.size) * a.dtype.itemsize for a in args[3:])
    act_bytes = 4 * B * D * 4
    cost = pl.CostEstimate(flops=flops, transcendentals=3 * B * N_SGA,
                           bytes_accessed=weight_bytes + act_bytes)

    grid_spec = pltpu.PrefetchScalarGridSpec(
        num_scalar_prefetch=1,
        grid=(N_SGA,),
        in_specs=[
            pl.BlockSpec((B, D), lambda i, r: (0, 0)),              # cell
            pl.BlockSpec((B, D), lambda i, r: (0, 0)),              # fp1
            pl.BlockSpec((B, D), lambda i, r: (0, 0)),              # fp2
            pl.BlockSpec((1, D, D), lambda i, r: (i, 0, 0)),        # watt1
            pl.BlockSpec((1, D, D), lambda i, r: (i, 0, 0)),        # watt2
            pl.BlockSpec((1, D, FF_SIZE), lambda i, r: (i, 0, 0)),  # f1w
            pl.BlockSpec((1, FF_SIZE, D), lambda i, r: (i, 0, 0)),  # f2w
            pl.BlockSpec((1, 9, D), lambda i, r: (i, 0, 0)),        # vecd
            pl.BlockSpec((1, 1, FF_SIZE), lambda i, r: (i, 0, 0)),  # vecf
        ],
        out_specs=pl.BlockSpec((B, D), lambda i, r: (0, 0)),
        scratch_shapes=[pltpu.VMEM((N_SLOTS, B, D), jnp.float32)],
    )

    return pl.pallas_call(
        hifusion_kernel,
        out_shape=jax.ShapeDtypeStruct((B, D), jnp.float32),
        grid_spec=grid_spec,
        compiler_params=pltpu.CompilerParams(
            dimension_semantics=("arbitrary",),      # steps carry state
            vmem_limit_bytes=8 * 1024 * 1024),
        cost_estimate=cost,
    )(route, *args)


# ---------------- parameter construction (deterministic, synthetic) -----------

def _linear(key, din, dout, scale=0.02):
    k1, k2 = jax.random.split(key)
    w = scale * jax.random.normal(k1, (din, dout), jnp.float32)
    b = scale * jax.random.normal(k2, (1, dout), jnp.float32)
    return w, b


def init_sga_raw(key, D, FF=FF_SIZE):
    ks = jax.random.split(key, 6)
    p = {}
    p["v1w"], p["v1b"] = _linear(ks[0], D, D)   # mhatt1.linear_v
    p["m1w"], p["m1b"] = _linear(ks[1], D, D)   # mhatt1.linear_merge
    p["v2w"], p["v2b"] = _linear(ks[2], D, D)   # mhatt2.linear_v
    p["m2w"], p["m2b"] = _linear(ks[3], D, D)   # mhatt2.linear_merge
    p["f1w"], p["f1b"] = _linear(ks[4], D, FF)  # ffn.mlp.fc.linear
    p["f2w"], p["f2b"] = _linear(ks[5], FF, D)  # ffn.mlp.linear
    for n in ("1", "2", "3"):
        p["g" + n] = jnp.ones((1, D), jnp.float32)    # LayerNorm weight
        p["bt" + n] = jnp.zeros((1, D), jnp.float32)  # LayerNorm bias
    return p


def init_hifusion(key, D):
    # Block order: 0,1=fp1cell  2,3=final1  4,5=fpfp  6,7=final2  8,9=final3
    keys = jax.random.split(key, N_SGA)
    return [init_sga_raw(k, D) for k in keys]


def pack_hifusion(raw_blocks):
    """Fold linear_v∘linear_merge, cast big weights to bf16, pack small vectors."""
    watt1, watt2, f1w, f2w, vecd, vecf = [], [], [], [], [], []
    for p in raw_blocks:
        wa1 = p["v1w"] @ p["m1w"]
        ba1 = p["v1b"] @ p["m1w"] + p["m1b"]
        wa2 = p["v2w"] @ p["m2w"]
        ba2 = p["v2b"] @ p["m2w"] + p["m2b"]
        watt1.append(wa1)
        watt2.append(wa2)
        f1w.append(p["f1w"])
        f2w.append(p["f2w"])
        vecd.append(jnp.concatenate(
            [ba1, ba2, p["f2b"], p["g1"], p["bt1"], p["g2"], p["bt2"],
             p["g3"], p["bt3"]], axis=0))        # (9, D)
        vecf.append(p["f1b"])                    # (1, FF)
    return {
        "watt1": jnp.stack(watt1).astype(jnp.bfloat16),  # (N, D, D)
        "watt2": jnp.stack(watt2).astype(jnp.bfloat16),  # (N, D, D)
        "f1w":   jnp.stack(f1w).astype(jnp.bfloat16),    # (N, D, FF)
        "f2w":   jnp.stack(f2w).astype(jnp.bfloat16),    # (N, FF, D)
        "vecd":  jnp.stack(vecd),                        # (N, 9, D)  f32
        "vecf":  jnp.stack(vecf),                        # (N, 1, FF) f32
    }


# ---------------- pure-JAX reference (mirrors kernel math; checks routing) ----

def hifusion_ref(packed, cell, fp1, fp2):
    watt1, watt2 = packed["watt1"], packed["watt2"]
    f1w, f2w = packed["f1w"], packed["f2w"]
    vecd, vecf = packed["vecd"], packed["vecf"]

    def ln(v, g, b):
        mean = jnp.mean(v, axis=-1, keepdims=True)
        var = jnp.mean(v * v, axis=-1, keepdims=True) - mean * mean
        return (v - mean) * jax.lax.rsqrt(var + EPS) * g + b

    def sga(i, x, y):
        vd = vecd[i]
        b_att1, b_att2, f2b = vd[0:1], vd[1:2], vd[2:3]
        g1, bt1, g2, bt2, g3, bt3 = vd[3:4], vd[4:5], vd[5:6], vd[6:7], vd[7:8], vd[8:9]
        f1b = vecf[i]
        a1 = jnp.dot(x.astype(jnp.bfloat16), watt1[i],
                     preferred_element_type=jnp.float32) + b_att1
        x = ln(x + a1, g1, bt1)
        a2 = jnp.dot(y.astype(jnp.bfloat16), watt2[i],
                     preferred_element_type=jnp.float32) + b_att2
        x = ln(x + a2, g2, bt2)
        h = jnp.maximum(jnp.dot(x.astype(jnp.bfloat16), f1w[i],
                                preferred_element_type=jnp.float32) + f1b, 0.0)
        f = jnp.dot(h.astype(jnp.bfloat16), f2w[i],
                    preferred_element_type=jnp.float32) + f2b
        return ln(x + f, g3, bt3)

    def fusion_modal(i0, a, b):
        a2 = sga(i0, a, b)
        b2 = sga(i0 + 1, b, a2)
        return a2 + b2

    fp1_cell = fusion_modal(0, cell, fp1)
    ff = fusion_modal(2, fp1_cell, fp2)
    fpfp = fusion_modal(4, fp1, fp2)
    ff2 = fusion_modal(6, fpfp, cell)
    return fusion_modal(8, ff, ff2)


if __name__ == "__main__":
    B, D = 8, 128  # embed_dim=128 (divisible by n_heads=8, lane-dense on TPU)
    key = jax.random.PRNGKey(0)
    kp, kc, k1, k2 = jax.random.split(key, 4)

    packed = pack_hifusion(init_hifusion(kp, D))
    cell_feature = jax.random.normal(kc, (B, D), jnp.float32)
    fp1_feature = jax.random.normal(k1, (B, D), jnp.float32)
    fp2_feature = jax.random.normal(k2, (B, D), jnp.float32)

    out = jax.jit(hifusion_apply)(packed, cell_feature, fp1_feature, fp2_feature)
    jax.block_until_ready(out)
    assert out.shape == (B, D) and out.dtype == jnp.float32
    assert bool(jnp.all(jnp.isfinite(out)))

    ref = jax.jit(hifusion_ref)(packed, cell_feature, fp1_feature, fp2_feature)
    jax.block_until_ready(ref)
    err = float(jnp.max(jnp.abs(out - ref)))
    assert err < 5e-2, f"kernel vs JAX reference mismatch: max abs err = {err}"

    print("KERNEL_OK")
</pallas_src>

<mosaic_0001>
module attributes {stable_mosaic.version = 11 : i64} {
  func.func @hifusion_kernel(%arg0: i32, %arg1: memref<10x4xi32, #tpu.memory_space<smem>>, %arg2: memref<8x128xf32, #tpu.memory_space<vmem>>, %arg3: memref<8x128xf32, #tpu.memory_space<vmem>>, %arg4: memref<8x128xf32, #tpu.memory_space<vmem>>, %arg5: memref<1x128x128xbf16, #tpu.memory_space<vmem>>, %arg6: memref<1x128x128xbf16, #tpu.memory_space<vmem>>, %arg7: memref<1x128x1024xbf16, #tpu.memory_space<vmem>>, %arg8: memref<1x1024x128xbf16, #tpu.memory_space<vmem>>, %arg9: memref<1x9x128xf32, #tpu.memory_space<vmem>>, %arg10: memref<1x1x1024xf32, #tpu.memory_space<vmem>>, %arg11: memref<8x128xf32, #tpu.memory_space<vmem>>, %arg12: memref<8x8x128xf32, #tpu.memory_space<vmem>>) attributes {dimension_semantics = [#tpu.dimension_semantics<arbitrary>], iteration_bounds = array<i64: 10>, scalar_prefetch = 1 : i64, scratch_operands = 1 : i64, tpu.core_type = #tpu.core_type<tc>, window_params = [{pipeline_mode = #tpu.pipeline_mode<synchronous>, transform_indices = @transform_0, window_bounds = array<i64: 8, 128>}, {pipeline_mode = #tpu.pipeline_mode<synchronous>, transform_indices = @transform_1, window_bounds = array<i64: 8, 128>}, {pipeline_mode = #tpu.pipeline_mode<synchronous>, transform_indices = @transform_2, window_bounds = array<i64: 8, 128>}, {transform_indices = @transform_3, window_bounds = array<i64: 1, 128, 128>}, {transform_indices = @transform_4, window_bounds = array<i64: 1, 128, 128>}, {transform_indices = @transform_5, window_bounds = array<i64: 1, 128, 1024>}, {transform_indices = @transform_6, window_bounds = array<i64: 1, 1024, 128>}, {transform_indices = @transform_7, window_bounds = array<i64: 1, 9, 128>}, {transform_indices = @transform_8, window_bounds = array<i64: 1, 1, 1024>}, {pipeline_mode = #tpu.pipeline_mode<synchronous>, transform_indices = @transform_9, window_bounds = array<i64: 8, 128>}]} {
    %c0_i32 = arith.constant 0 : i32
    %0 = arith.cmpi eq, %arg0, %c0_i32 : i32
    %1 = arith.extui %0 : i1 to i32
    %c0_i32_0 = arith.constant 0 : i32
    %2 = arith.cmpi ne, %1, %c0_i32_0 : i32
    scf.if %2 {
      %c0_45 = arith.constant 0 : index
      %c0_46 = arith.constant 0 : index
      %136 = vector.load %arg2[%c0_45, %c0_46] : memref<8x128xf32, #tpu.memory_space<vmem>>, vector<8x128xf32>
      %c0_47 = arith.constant 0 : index
      %c0_48 = arith.constant 0 : index
      %c0_49 = arith.constant 0 : index
      %137 = vector.load %arg12[%c0_47, %c0_48, %c0_49] : memref<8x8x128xf32, #tpu.memory_space<vmem>>, vector<1x8x128xf32>
      %138 = vector.shape_cast %137 : vector<1x8x128xf32> to vector<8x128xf32>
      %139 = vector.shape_cast %136 : vector<8x128xf32> to vector<1x8x128xf32>
      tpu.vector_store %arg12[%c0_47, %c0_48, %c0_49], %139 {strides = array<i32>} : memref<8x8x128xf32, #tpu.memory_space<vmem>>, vector<1x8x128xf32>,
      %c0_50 = arith.constant 0 : index
      %c0_51 = arith.constant 0 : index
      %140 = vector.load %arg3[%c0_50, %c0_51] : memref<8x128xf32, #tpu.memory_space<vmem>>, vector<8x128xf32>
      %c1_52 = arith.constant 1 : index
      %c0_53 = arith.constant 0 : index
      %c0_54 = arith.constant 0 : index
      %141 = vector.load %arg12[%c1_52, %c0_53, %c0_54] : memref<8x8x128xf32, #tpu.memory_space<vmem>>, vector<1x8x128xf32>
      %142 = vector.shape_cast %141 : vector<1x8x128xf32> to vector<8x128xf32>
      %143 = vector.shape_cast %140 : vector<8x128xf32> to vector<1x8x128xf32>
      tpu.vector_store %arg12[%c1_52, %c0_53, %c0_54], %143 {strides = array<i32>} : memref<8x8x128xf32, #tpu.memory_space<vmem>>, vector<1x8x128xf32>,
      %c0_55 = arith.constant 0 : index
      %c0_56 = arith.constant 0 : index
      %144 = vector.load %arg4[%c0_55, %c0_56] : memref<8x128xf32, #tpu.memory_space<vmem>>, vector<8x128xf32>
      %c2_57 = arith.constant 2 : index
      %c0_58 = arith.constant 0 : index
      %c0_59 = arith.constant 0 : index
      %145 = vector.load %arg12[%c2_57, %c0_58, %c0_59] : memref<8x8x128xf32, #tpu.memory_space<vmem>>, vector<1x8x128xf32>
      %146 = vector.shape_cast %145 : vector<1x8x128xf32> to vector<8x128xf32>
      %147 = vector.shape_cast %144 : vector<8x128xf32> to vector<1x8x128xf32>
      tpu.vector_store %arg12[%c2_57, %c0_58, %c0_59], %147 {strides = array<i32>} : memref<8x8x128xf32, #tpu.memory_space<vmem>>, vector<1x8x128xf32>,
    } else {
    }
    %3 = arith.index_cast %arg0 : i32 to index
    %c0 = arith.constant 0 : index
    %4 = memref.load %arg1[%3, %c0] : memref<10x4xi32, #tpu.memory_space<smem>>
    %5 = arith.index_cast %arg0 : i32 to index
    %c1 = arith.constant 1 : index
    %6 = memref.load %arg1[%5, %c1] : memref<10x4xi32, #tpu.memory_space<smem>>
    %7 = arith.index_cast %arg0 : i32 to index
    %c2 = arith.constant 2 : index
    %8 = memref.load %arg1[%7, %c2] : memref<10x4xi32, #tpu.memory_space<smem>>
    %9 = arith.index_cast %arg0 : i32 to index
    %c3 = arith.constant 3 : index
    %10 = memref.load %arg1[%9, %c3] : memref<10x4xi32, #tpu.memory_space<smem>>
    %11 = arith.index_cast %4 : i32 to index
    %c0_1 = arith.constant 0 : index
    %c0_2 = arith.constant 0 : index
    %12 = vector.load %arg12[%11, %c0_1, %c0_2] : memref<8x8x128xf32, #tpu.memory_space<vmem>>, vector<1x8x128xf32>
    %13 = vector.shape_cast %12 : vector<1x8x128xf32> to vector<8x128xf32>
    %14 = arith.index_cast %6 : i32 to index
    %c0_3 = arith.constant 0 : index
    %c0_4 = arith.constant 0 : index
    %15 = vector.load %arg12[%14, %c0_3, %c0_4] : memref<8x8x128xf32, #tpu.memory_space<vmem>>, vector<1x8x128xf32>
    %16 = vector.shape_cast %15 : vector<1x8x128xf32> to vector<8x128xf32>
    %c0_5 = arith.constant 0 : index
    %c0_6 = arith.constant 0 : index
    %c0_7 = arith.constant 0 : index
    %17 = vector.load %arg9[%c0_5, %c0_6, %c0_7] : memref<1x9x128xf32, #tpu.memory_space<vmem>>, vector<1x9x128xf32>
    %18 = vector.shape_cast %17 : vector<1x9x128xf32> to vector<9x128xf32>
    %19 = vector.extract_strided_slice %18 {offsets = [0, 0], sizes = [1, 128], strides = [1, 1]} : vector<9x128xf32> to vector<1x128xf32>
    %20 = vector.extract_strided_slice %18 {offsets = [1, 0], sizes = [1, 128], strides = [1, 1]} : vector<9x128xf32> to vector<1x128xf32>
    %21 = vector.extract_strided_slice %18 {offsets = [2, 0], sizes = [1, 128], strides = [1, 1]} : vector<9x128xf32> to vector<1x128xf32>
    %22 = vector.extract_strided_slice %18 {offsets = [3, 0], sizes = [1, 128], strides = [1, 1]} : vector<9x128xf32> to vector<1x128xf32>
    %23 = vector.extract_strided_slice %18 {offsets = [4, 0], sizes = [1, 128], strides = [1, 1]} : vector<9x128xf32> to vector<1x128xf32>
    %24 = vector.extract_strided_slice %18 {offsets = [5, 0], sizes = [1, 128], strides = [1, 1]} : vector<9x128xf32> to vector<1x128xf32>
    %25 = vector.extract_strided_slice %18 {offsets = [6, 0], sizes = [1, 128], strides = [1, 1]} : vector<9x128xf32> to vector<1x128xf32>
    %26 = vector.extract_strided_slice %18 {offsets = [7, 0], sizes = [1, 128], strides = [1, 1]} : vector<9x128xf32> to vector<1x128xf32>
    %27 = vector.extract_strided_slice %18 {offsets = [8, 0], sizes = [1, 128], strides = [1, 1]} : vector<9x128xf32> to vector<1x128xf32>
    %c0_8 = arith.constant 0 : index
    %c0_9 = arith.constant 0 : index
    %c0_10 = arith.constant 0 : index
    %28 = vector.load %arg10[%c0_8, %c0_9, %c0_10] : memref<1x1x1024xf32, #tpu.memory_space<vmem>>, vector<1x1x1024xf32>
    %29 = vector.shape_cast %28 : vector<1x1x1024xf32> to vector<1x1024xf32>
    %30 = arith.truncf %13 : vector<8x128xf32> to vector<8x128xbf16>
    %c0_11 = arith.constant 0 : index
    %c0_12 = arith.constant 0 : index
    %c0_13 = arith.constant 0 : index
    %31 = vector.load %arg5[%c0_11, %c0_12, %c0_13] : memref<1x128x128xbf16, #tpu.memory_space<vmem>>, vector<1x128x128xbf16>
    %32 = vector.shape_cast %31 : vector<1x128x128xbf16> to vector<128x128xbf16>
    %cst = arith.constant dense<0.000000e+00> : vector<8x128xf32>
    %33 = tpu.matmul %30, %32, %cst {dimension_numbers = #tpu.dot_dimension_numbers<[1], [0], [0], [1], [0, 0, 1, 1], [], []>} : vector<8x128xbf16>, vector<128x128xbf16>, vector<8x128xf32> -> vector<8x128xf32>
    %34 = vector.broadcast %19 : vector<1x128xf32> to vector<8x128xf32>
    %35 = arith.addf %33, %34 : vector<8x128xf32>
    %36 = arith.addf %13, %35 : vector<8x128xf32>
    %cst_14 = arith.constant dense<0.000000e+00> : vector<8xf32>
    %37 = vector.multi_reduction <add>, %36, %cst_14 [1] : vector<8x128xf32> to vector<8xf32>
    %38 = vector.shape_cast %37 : vector<8xf32> to vector<8x1xf32>
    %39 = arith.mulf %36, %36 : vector<8x128xf32>
    %cst_15 = arith.constant dense<0.000000e+00> : vector<8xf32>
    %40 = vector.multi_reduction <add>, %39, %cst_15 [1] : vector<8x128xf32> to vector<8xf32>
    %41 = vector.shape_cast %40 : vector<8xf32> to vector<8x1xf32>
    %cst_16 = arith.constant 7.812500e-03 : f32
    %42 = vector.broadcast %cst_16 : f32 to vector<8x1xf32>
    %43 = arith.mulf %38, %42 : vector<8x1xf32>
    %cst_17 = arith.constant 7.812500e-03 : f32
    %44 = vector.broadcast %cst_17 : f32 to vector<8x1xf32>
    %45 = arith.mulf %41, %44 : vector<8x1xf32>
    %46 = arith.mulf %43, %43 : vector<8x1xf32>
    %47 = arith.subf %45, %46 : vector<8x1xf32>
    %48 = vector.broadcast %43 : vector<8x1xf32> to vector<8x128xf32>
    %49 = arith.subf %36, %48 : vector<8x128xf32>
    %cst_18 = arith.constant 9.99999997E-7 : f32
    %50 = vector.broadcast %cst_18 : f32 to vector<8x1xf32>
    %51 = arith.addf %47, %50 : vector<8x1xf32>
    %52 = math.rsqrt %51 : vector<8x1xf32>
    %53 = vector.broadcast %52 : vector<8x1xf32> to vector<8x128xf32>
    %54 = arith.mulf %49, %53 : vector<8x128xf32>
    %55 = vector.broadcast %22 : vector<1x128xf32> to vector<8x128xf32>
    %56 = arith.mulf %54, %55 : vector<8x128xf32>
    %57 = vector.broadcast %23 : vector<1x128xf32> to vector<8x128xf32>
    %58 = arith.addf %56, %57 : vector<8x128xf32>
    %59 = arith.truncf %16 : vector<8x128xf32> to vector<8x128xbf16>
    %c0_19 = arith.constant 0 : index
    %c0_20 = arith.constant 0 : index
    %c0_21 = arith.constant 0 : index
    %60 = vector.load %arg6[%c0_19, %c0_20, %c0_21] : memref<1x128x128xbf16, #tpu.memory_space<vmem>>, vector<1x128x128xbf16>
    %61 = vector.shape_cast %60 : vector<1x128x128xbf16> to vector<128x128xbf16>
    %cst_22 = arith.constant dense<0.000000e+00> : vector<8x128xf32>
    %62 = tpu.matmul %59, %61, %cst_22 {dimension_numbers = #tpu.dot_dimension_numbers<[1], [0], [0], [1], [0, 0, 1, 1], [], []>} : vector<8x128xbf16>, vector<128x128xbf16>, vector<8x128xf32> -> vector<8x128xf32>
    %63 = vector.broadcast %20 : vector<1x128xf32> to vector<8x128xf32>
    %64 = arith.addf %62, %63 : vector<8x128xf32>
    %65 = arith.addf %58, %64 : vector<8x128xf32>
    %cst_23 = arith.constant dense<0.000000e+00> : vector<8xf32>
    %66 = vector.multi_reduction <add>, %65, %cst_23 [1] : vector<8x128xf32> to vector<8xf32>
    %67 = vector.shape_cast %66 : vector<8xf32> to vector<8x1xf32>
    %68 = arith.mulf %65, %65 : vector<8x128xf32>
    %cst_24 = arith.constant dense<0.000000e+00> : vector<8xf32>
    %69 = vector.multi_reduction <add>, %68, %cst_24 [1] : vector<8x128xf32> to vector<8xf32>
    %70 = vector.shape_cast %69 : vector<8xf32> to vector<8x1xf32>
    %cst_25 = arith.constant 7.812500e-03 : f32
    %71 = vector.broadcast %cst_25 : f32 to vector<8x1xf32>
    %72 = arith.mulf %67, %71 : vector<8x1xf32>
    %cst_26 = arith.constant 7.812500e-03 : f32
    %73 = vector.broadcast %cst_26 : f32 to vector<8x1xf32>
    %74 = arith.mulf %70, %73 : vector<8x1xf32>
    %75 = arith.mulf %72, %72 : vector<8x1xf32>
    %76 = arith.subf %74, %75 : vector<8x1xf32>
    %77 = vector.broadcast %72 : vector<8x1xf32> to vector<8x128xf32>
    %78 = arith.subf %65, %77 : vector<8x128xf32>
    %cst_27 = arith.constant 9.99999997E-7 : f32
    %79 = vector.broadcast %cst_27 : f32 to vector<8x1xf32>
    %80 = arith.addf %76, %79 : vector<8x1xf32>
    %81 = math.rsqrt %80 : vector<8x1xf32>
    %82 = vector.broadcast %81 : vector<8x1xf32> to vector<8x128xf32>
    %83 = arith.mulf %78, %82 : vector<8x128xf32>
    %84 = vector.broadcast %24 : vector<1x128xf32> to vector<8x128xf32>
    %85 = arith.mulf %83, %84 : vector<8x128xf32>
    %86 = vector.broadcast %25 : vector<1x128xf32> to vector<8x128xf32>
    %87 = arith.addf %85, %86 : vector<8x128xf32>
    %88 = arith.truncf %87 : vector<8x128xf32> to vector<8x128xbf16>
    %c0_28 = arith.constant 0 : index
    %c0_29 = arith.constant 0 : index
    %c0_30 = arith.constant 0 : index
    %89 = vector.load %arg7[%c0_28, %c0_29, %c0_30] : memref<1x128x1024xbf16, #tpu.memory_space<vmem>>, vector<1x128x1024xbf16>
    %90 = vector.shape_cast %89 : vector<1x128x1024xbf16> to vector<128x1024xbf16>
    %cst_31 = arith.constant dense<0.000000e+00> : vector<8x1024xf32>
    %91 = tpu.matmul %88, %90, %cst_31 {dimension_numbers = #tpu.dot_dimension_numbers<[1], [0], [0], [1], [0, 0, 1, 1], [], []>} : vector<8x128xbf16>, vector<128x1024xbf16>, vector<8x1024xf32> -> vector<8x1024xf32>
    %92 = vector.broadcast %29 : vector<1x1024xf32> to vector<8x1024xf32>
    %93 = arith.addf %91, %92 : vector<8x1024xf32>
    %cst_32 = arith.constant 0.000000e+00 : f32
    %94 = vector.broadcast %cst_32 : f32 to vector<8x1024xf32>
    %95 = arith.maximumf %93, %94 : vector<8x1024xf32>
    %96 = arith.truncf %95 : vector<8x1024xf32> to vector<8x1024xbf16>
    %c0_33 = arith.constant 0 : index
    %c0_34 = arith.constant 0 : index
    %c0_35 = arith.constant 0 : index
    %97 = vector.load %arg8[%c0_33, %c0_34, %c0_35] : memref<1x1024x128xbf16, #tpu.memory_space<vmem>>, vector<1x1024x128xbf16>
    %98 = vector.shape_cast %97 : vector<1x1024x128xbf16> to vector<1024x128xbf16>
    %cst_36 = arith.constant dense<0.000000e+00> : vector<8x128xf32>
    %99 = tpu.matmul %96, %98, %cst_36 {dimension_numbers = #tpu.dot_dimension_numbers<[1], [0], [0], [1], [0, 0, 1, 1], [], []>} : vector<8x1024xbf16>, vector<1024x128xbf16>, vector<8x128xf32> -> vector<8x128xf32>
    %100 = vector.broadcast %21 : vector<1x128xf32> to vector<8x128xf32>
    %101 = arith.addf %99, %100 : vector<8x128xf32>
    %102 = arith.addf %87, %101 : vector<8x128xf32>
    %cst_37 = arith.constant dense<0.000000e+00> : vector<8xf32>
    %103 = vector.multi_reduction <add>, %102, %cst_37 [1] : vector<8x128xf32> to vector<8xf32>
    %104 = vector.shape_cast %103 : vector<8xf32> to vector<8x1xf32>
    %105 = arith.mulf %102, %102 : vector<8x128xf32>
    %cst_38 = arith.constant dense<0.000000e+00> : vector<8xf32>
    %106 = vector.multi_reduction <add>, %105, %cst_38 [1] : vector<8x128xf32> to vector<8xf32>
    %107 = vector.shape_cast %106 : vector<8xf32> to vector<8x1xf32>
    %cst_39 = arith.constant 7.812500e-03 : f32
    %108 = vector.broadcast %cst_39 : f32 to vector<8x1xf32>
    %109 = arith.mulf %104, %108 : vector<8x1xf32>
    %cst_40 = arith.constant 7.812500e-03 : f32
    %110 = vector.broadcast %cst_40 : f32 to vector<8x1xf32>
    %111 = arith.mulf %107, %110 : vector<8x1xf32>
    %112 = arith.mulf %109, %109 : vector<8x1xf32>
    %113 = arith.subf %111, %112 : vector<8x1xf32>
    %114 = vector.broadcast %109 : vector<8x1xf32> to vector<8x128xf32>
    %115 = arith.subf %102, %114 : vector<8x128xf32>
    %cst_41 = arith.constant 9.99999997E-7 : f32
    %116 = vector.broadcast %cst_41 : f32 to vector<8x1xf32>
    %117 = arith.addf %113, %116 : vector<8x1xf32>
    %118 = math.rsqrt %117 : vector<8x1xf32>
    %119 = vector.broadcast %118 : vector<8x1xf32> to vector<8x128xf32>
    %120 = arith.mulf %115, %119 : vector<8x128xf32>
    %121 = vector.broadcast %26 : vector<1x128xf32> to vector<8x128xf32>
    %122 = arith.mulf %120, %121 : vector<8x128xf32>
    %123 = vector.broadcast %27 : vector<1x128xf32> to vector<8x128xf32>
    %124 = arith.addf %122, %123 : vector<8x128xf32>
    %125 = arith.sitofp %10 : i32 to f32
    %126 = vector.broadcast %125 : f32 to vector<8x128xf32>
    %127 = arith.mulf %16, %126 : vector<8x128xf32>
    %128 = arith.addf %124, %127 : vector<8x128xf32>
    %129 = arith.index_cast %8 : i32 to index
    %c0_42 = arith.constant 0 : index
    %c0_43 = arith.constant 0 : index
    %130 = vector.load %arg12[%129, %c0_42, %c0_43] : memref<8x8x128xf32, #tpu.memory_space<vmem>>, vector<1x8x128xf32>
    %131 = vector.shape_cast %130 : vector<1x8x128xf32> to vector<8x128xf32>
    %132 = vector.shape_cast %128 : vector<8x128xf32> to vector<1x8x128xf32>
    tpu.vector_store %arg12[%129, %c0_42, %c0_43], %132 {strides = array<i32>} : memref<8x8x128xf32, #tpu.memory_space<vmem>>, vector<1x8x128xf32>,
    %c9_i32 = arith.constant 9 : i32
    %133 = arith.cmpi eq, %arg0, %c9_i32 : i32
    %134 = arith.extui %133 : i1 to i32
    %c0_i32_44 = arith.constant 0 : i32
    %135 = arith.cmpi ne, %134, %c0_i32_44 : i32
    scf.if %135 {
      %c0_45 = arith.constant 0 : index
      %c0_46 = arith.constant 0 : index
      %136 = vector.load %arg11[%c0_45, %c0_46] : memref<8x128xf32, #tpu.memory_space<vmem>>, vector<8x128xf32>
      tpu.vector_store %arg11[%c0_45, %c0_46], %128 {strides = array<i32>} : memref<8x128xf32, #tpu.memory_space<vmem>>, vector<8x128xf32>,
    } else {
    }
    return
  }
  func.func @transform_0(%arg0: i32, %arg1: memref<10x4xi32, #tpu.memory_space<smem>>) -> (i32, i32) {
    %c0_i32 = arith.constant 0 : i32
    %c0_i32_0 = arith.constant 0 : i32
    %c0_i32_1 = arith.constant 0 : i32
    return %c0_i32, %c0_i32_0 : i32, i32
  }
  func.func @transform_1(%arg0: i32, %arg1: memref<10x4xi32, #tpu.memory_space<smem>>) -> (i32, i32) {
    %c0_i32 = arith.constant 0 : i32
    %c0_i32_0 = arith.constant 0 : i32
    %c0_i32_1 = arith.constant 0 : i32
    return %c0_i32, %c0_i32_0 : i32, i32
  }
  func.func @transform_2(%arg0: i32, %arg1: memref<10x4xi32, #tpu.memory_space<smem>>) -> (i32, i32) {
    %c0_i32 = arith.constant 0 : i32
    %c0_i32_0 = arith.constant 0 : i32
    %c0_i32_1 = arith.constant 0 : i32
    return %c0_i32, %c0_i32_0 : i32, i32
  }
  func.func @transform_3(%arg0: i32, %arg1: memref<10x4xi32, #tpu.memory_space<smem>>) -> (i32, i32, i32) {
    %c0_i32 = arith.constant 0 : i32
    %c0_i32_0 = arith.constant 0 : i32
    %c0_i32_1 = arith.constant 0 : i32
    return %arg0, %c0_i32, %c0_i32_0 : i32, i32, i32
  }
  func.func @transform_4(%arg0: i32, %arg1: memref<10x4xi32, #tpu.memory_space<smem>>) -> (i32, i32, i32) {
    %c0_i32 = arith.constant 0 : i32
    %c0_i32_0 = arith.constant 0 : i32
    %c0_i32_1 = arith.constant 0 : i32
    return %arg0, %c0_i32, %c0_i32_0 : i32, i32, i32
  }
  func.func @transform_5(%arg0: i32, %arg1: memref<10x4xi32, #tpu.memory_space<smem>>) -> (i32, i32, i32) {
    %c0_i32 = arith.constant 0 : i32
    %c0_i32_0 = arith.constant 0 : i32
    %c0_i32_1 = arith.constant 0 : i32
    return %arg0, %c0_i32, %c0_i32_0 : i32, i32, i32
  }
  func.func @transform_6(%arg0: i32, %arg1: memref<10x4xi32, #tpu.memory_space<smem>>) -> (i32, i32, i32) {
    %c0_i32 = arith.constant 0 : i32
    %c0_i32_0 = arith.constant 0 : i32
    %c0_i32_1 = arith.constant 0 : i32
    return %arg0, %c0_i32, %c0_i32_0 : i32, i32, i32
  }
  func.func @transform_7(%arg0: i32, %arg1: memref<10x4xi32, #tpu.memory_space<smem>>) -> (i32, i32, i32) {
    %c0_i32 = arith.constant 0 : i32
    %c0_i32_0 = arith.constant 0 : i32
    %c0_i32_1 = arith.constant 0 : i32
    return %arg0, %c0_i32, %c0_i32_0 : i32, i32, i32
  }
  func.func @transform_8(%arg0: i32, %arg1: memref<10x4xi32, #tpu.memory_space<smem>>) -> (i32, i32, i32) {
    %c0_i32 = arith.constant 0 : i32
    %c0_i32_0 = arith.constant 0 : i32
    %c0_i32_1 = arith.constant 0 : i32
    return %arg0, %c0_i32, %c0_i32_0 : i32, i32, i32
  }
  func.func @transform_9(%arg0: i32, %arg1: memref<10x4xi32, #tpu.memory_space<smem>>) -> (i32, i32) {
    %c0_i32 = arith.constant 0 : i32
    %c0_i32_0 = arith.constant 0 : i32
    %c0_i32_1 = arith.constant 0 : i32
    return %c0_i32, %c0_i32_0 : i32, i32
  }
}

</mosaic_0001>

<llo_original>
// kernel: hifusion_apply.1
$region0: #{hifusion_apply.1}
  #allocation0 [shape = 'u32[]', space=smem, size = 0x4, offset = 0x4, fixed_abs, tag = 'smem constant byte address 0x4 - core index']
  #allocation1 [shape = 'u32[144,128]{1,0:T(1,128)}', space=vmem, size = 0x12000, scoped, tag = 'internal scratch']
  #allocation2 [shape = 'f32[8,8,128]{2,1,0:T(8,128)}', space=vmem, size = 0x8000, scoped, tag = 'scratch operand']
  #allocation3 [shape = 's32[1]{0}', space=sflag, size = 0x4, scoped, tag = 'scoped memory for hifusion_apply.1']
  #allocation4 [shape = 'u8[8192]{0}', space=smem, size = 0x2000, scoped, tag = 'prefetched SMEM operand 0']
  %s0 = inlined_call_operand.hbm [shape: s32[10,4], index: 0, kind: input, shape index: {}]
  %s1 = inlined_call_operand.hbm [shape: f32[8,128], index: 1, kind: input, shape index: {}]
  %s2 = inlined_call_operand.hbm [shape: f32[8,128], index: 2, kind: input, shape index: {}]
  %s3 = inlined_call_operand.hbm [shape: f32[8,128], index: 3, kind: input, shape index: {}]
  %s4 = inlined_call_operand.hbm [shape: bf16[10,128,128], index: 4, kind: input, shape index: {}]
  %s5 = inlined_call_operand.hbm [shape: bf16[10,128,128], index: 5, kind: input, shape index: {}]
  %s6 = inlined_call_operand.hbm [shape: bf16[10,128,1024], index: 6, kind: input, shape index: {}]
  %s7 = inlined_call_operand.hbm [shape: bf16[10,1024,128], index: 7, kind: input, shape index: {}]
  %s8 = inlined_call_operand.vmem [shape: f32[10,9,128], index: 8, kind: input, shape index: {}]
  %s9 = inlined_call_operand.hbm [shape: f32[10,1,1024], index: 9, kind: input, shape index: {}]
  %s10 = inlined_call_operand.hbm [shape: f32[8,128], index: 10, kind: output, shape index: {}]
  %s11 = sld [smem:[#allocation0]]
  $region109: #{hifusion_apply.1} parent=0
    _
  %s13 = ssub.s32 1, %s11
  %s14 = scalar_select 0, %s13, %s11
  %16 = dma.hbm_to_smem %s0, 256, [#allocation4], [#allocation3]
  %17 = dma.done [#allocation3], 256
  %18 = sfence
  $region1: #{hifusion_apply.1} parent=0
    #allocation5 [shape = 'u8[4096]{0}', space=vmem, size = 0x1000, scoped, tag = 'input window, operand 1, single buffered']
    #allocation6 [shape = 's32[2]{0}', space=sflag, size = 0x8, scoped, tag = 'scoped memory for hifusion_apply.1']
    #allocation7 [shape = 's32[2]{0}', space=sflag, size = 0x8, scoped, tag = 'scoped memory for hifusion_apply.1']
    #allocation8 [shape = 'u8[4096]{0}', space=vmem, size = 0x1000, scoped, tag = 'input window, operand 2, single buffered']
    #allocation9 [shape = 's32[1]{0}', space=sflag, size = 0x4, scoped, tag = 'scoped memory for hifusion_apply.1']
    #allocation10 [shape = 'u8[4096]{0}', space=vmem, size = 0x1000, scoped, tag = 'input window, operand 3, single buffered']
    #allocation11 [shape = 'u8[65536]{0}', space=vmem, size = 0x10000, scoped, tag = 'input window, operand 4']
    #allocation12 [shape = 's32[2]{0}', space=sflag, size = 0x8, scoped, tag = 'scoped memory for hifusion_apply.1']
    #allocation13 [shape = 'u8[65536]{0}', space=vmem, size = 0x10000, scoped, tag = 'input window, operand 5']
    #allocation14 [shape = 'u8[524288]{0}', space=vmem, size = 0x80000, scoped, tag = 'input window, operand 6']
    #allocation15 [shape = 's32[2]{0}', space=sflag, size = 0x8, scoped, tag = 'scoped memory for hifusion_apply.1']
    #allocation16 [shape = 'u8[524288]{0}', space=vmem, size = 0x80000, scoped, tag = 'input window, operand 7']
    #allocation17 [shape = 'u8[8192]{0}', space=vmem, size = 0x2000, scoped, tag = 'input window, operand 9']
    #allocation18 [shape = 's32[2]{0}', space=sflag, size = 0x8, scoped, tag = 'scoped memory for hifusion_apply.1']
    #allocation19 [shape = 'u8[4096]{0}', space=vmem, size = 0x1000, scoped, tag = 'output window, operand 0, single buffered']
    %19 = vsyncpa [#allocation6], 0
    %20 = vsyncpa [#allocation9], 0
    %21 = vsyncpa [#allocation12], 0
    %s22 = scalar_lea.sflag [#allocation12], 1
    %23 = vsyncpa %s22, 0
    %24 = vsyncpa [#allocation15], 0
    %s25 = scalar_lea.sflag [#allocation15], 1
    %26 = vsyncpa %s25, 0
    %27 = vsyncpa [#allocation18], 0
    %s28 = scalar_lea.sflag [#allocation18], 1
    %29 = vsyncpa %s28, 0
    %30 = vsyncpa [#allocation7], 0
    loop: start=0, step=1, limit=12
    $region2: #{hifusion_apply.1} parent=1 // loop_pre_header
      _
    $region3: #{hifusion_apply.1} parent=1 // loop_header
      %s32 = sphi 0, %s36
      %p33 = scmp.ge.s32.totalorder %s32, 12
      %s40 = sphi 0, %s40
      %s42 = sphi 0, %s40
      %s43 = sphi 0, %s42
      %s57 = sphi 0, %s43
      %s61 = sphi 0, %s61
      %s63 = sphi 0, %s61
      %s64 = sphi 0, %s63
      %s78 = sphi 0, %s64
      %s82 = sphi 0, %s82
      %s84 = sphi 0, %s82
      %s85 = sphi 0, %s84
      %s99 = sphi 0, %s85
      %s105 = sphi 0, %s107
      %s108 = sphi 0, %s105
      %s109 = sphi 0, %s108
      %s125 = sphi 0, %s109
      %s131 = sphi 0, %s133
      %s134 = sphi 0, %s131
      %s135 = sphi 0, %s134
      %s151 = sphi 0, %s135
      %s157 = sphi 0, %s159
      %s160 = sphi 0, %s157
      %s161 = sphi 0, %s160
      %s177 = sphi 0, %s161
      %s183 = sphi 0, %s185
      %s186 = sphi 0, %s183
      %s187 = sphi 0, %s186
      %s203 = sphi 0, %s187
      %s209 = sphi 0, %s211
      %s212 = sphi 0, %s209
      %s213 = sphi 0, %s212
      %s229 = sphi 0, %s213
      %s235 = sphi 0, %s237
      %s238 = sphi 0, %s235
      %s239 = sphi 0, %s238
      %s255 = sphi 0, %s239
      %s259 = sphi 0, %s259
      %s261 = sphi 0, %s259
      %s262 = sphi 0, %s261
      %s276 = sphi 0, %s262
    $region4: #{hifusion_apply.1} parent=1 // loop_header_branch
      %35 = sbr.rel (%p33) target = $region8
    $region5: #{hifusion_apply.1} parent=1 // loop_body
      %s37 = ssub.s32 %s32, 1
      %s38 = ssub.s32 %s32, 2
      %s39 = sadd.s32 %s32, 1
      %s41 = sadd.s32 %s40, 1
      %p44 = scmp.eq.s32.totalorder %s32, 9
      %p45 = scmp.ne.s32.totalorder %s40, %s42
      %p46 = scmp.eq.s32.totalorder %s32, 0
      %p47 = por %p45, %p46
      %p48 = scmp.ne.s32.totalorder %s40, %s42
      %p49 = scmp.eq.s32.totalorder %s37, 9
      %p50 = por %p48, %p49
      %p51 = scmp.ne.s32.totalorder %s42, %s43
      %p52 = scmp.eq.s32.totalorder %s37, 0
      %p53 = por %p51, %p52
      %p54 = scmp.ne.s32.totalorder %s42, %s43
      %p55 = scmp.eq.s32.totalorder %s38, 9
      %p56 = por %p54, %p55
      %p58 = scmp.ne.s32.totalorder %s43, %s57
      %p59 = scmp.eq.s32.totalorder %s38, 0
      %p60 = por %p58, %p59
      %s62 = sadd.s32 %s61, 1
      %p65 = scmp.eq.s32.totalorder %s32, 9
      %p66 = scmp.ne.s32.totalorder %s61, %s63
      %p67 = scmp.eq.s32.totalorder %s32, 0
      %p68 = por %p66, %p67
      %p69 = scmp.ne.s32.totalorder %s61, %s63
      %p70 = scmp.eq.s32.totalorder %s37, 9
      %p71 = por %p69, %p70
      %p72 = scmp.ne.s32.totalorder %s63, %s64
      %p73 = scmp.eq.s32.totalorder %s37, 0
      %p74 = por %p72, %p73
      %p75 = scmp.ne.s32.totalorder %s63, %s64
      %p76 = scmp.eq.s32.totalorder %s38, 9
      %p77 = por %p75, %p76
      %p79 = scmp.ne.s32.totalorder %s64, %s78
      %p80 = scmp.eq.s32.totalorder %s38, 0
      %p81 = por %p79, %p80
      %s83 = sadd.s32 %s82, 1
      %p86 = scmp.eq.s32.totalorder %s32, 9
      %p87 = scmp.ne.s32.totalorder %s82, %s84
      %p88 = scmp.eq.s32.totalorder %s32, 0
      %p89 = por %p87, %p88
      %p90 = scmp.ne.s32.totalorder %s82, %s84
      %p91 = scmp.eq.s32.totalorder %s37, 9
      %p92 = por %p90, %p91
      %p93 = scmp.ne.s32.totalorder %s84, %s85
      %p94 = scmp.eq.s32.totalorder %s37, 0
      %p95 = por %p93, %p94
      %p96 = scmp.ne.s32.totalorder %s84, %s85
      %p97 = scmp.eq.s32.totalorder %s38, 9
      %p98 = por %p96, %p97
      %p100 = scmp.ne.s32.totalorder %s85, %s99
      %p101 = scmp.eq.s32.totalorder %s38, 0
      %p102 = por %p100, %p101
      %s103 = ssub.s32 %s32, %s39
      %p104 = scmp.eq.s32.totalorder %s103, 0
      %s106 = sadd.s32 %s105, 1
      %s107 = scalar_select %p104, %s105, %s106
      %p110 = pneg %p104
      %p111 = scmp.eq.s32.totalorder %s32, 9
      %p112 = por %p110, %p111
      %p113 = scmp.ne.s32.totalorder %s105, %s108
      %p114 = scmp.eq.s32.totalorder %s32, 0
      %p115 = por %p113, %p114
      %p116 = scmp.ne.s32.totalorder %s105, %s108
      %p117 = scmp.eq.s32.totalorder %s37, 9
      %p118 = por %p116, %p117
      %p119 = scmp.ne.s32.totalorder %s108, %s109
      %p120 = scmp.eq.s32.totalorder %s37, 0
      %p121 = por %p119, %p120
      %p122 = scmp.ne.s32.totalorder %s108, %s109
      %p123 = scmp.eq.s32.totalorder %s38, 9
      %p124 = por %p122, %p123
      %p126 = scmp.ne.s32.totalorder %s109, %s125
      %p127 = scmp.eq.s32.totalorder %s38, 0
      %p128 = por %p126, %p127
      %s129 = ssub.s32 %s32, %s39
      %p130 = scmp.eq.s32.totalorder %s129, 0
      %s132 = sadd.s32 %s131, 1
      %s133 = scalar_select %p130, %s131, %s132
      %p136 = pneg %p130
      %p137 = scmp.eq.s32.totalorder %s32, 9
      %p138 = por %p136, %p137
      %p139 = scmp.ne.s32.totalorder %s131, %s134
      %p140 = scmp.eq.s32.totalorder %s32, 0
      %p141 = por %p139, %p140
      %p142 = scmp.ne.s32.totalorder %s131, %s134
      %p143 = scmp.eq.s32.totalorder %s37, 9
      %p144 = por %p142, %p143
      %p145 = scmp.ne.s32.totalorder %s134, %s135
      %p146 = scmp.eq.s32.totalorder %s37, 0
      %p147 = por %p145, %p146
      %p148 = scmp.ne.s32.totalorder %s134, %s135
      %p149 = scmp.eq.s32.totalorder %s38, 9
      %p150 = por %p148, %p149
      %p152 = scmp.ne.s32.totalorder %s135, %s151
      %p153 = scmp.eq.s32.totalorder %s38, 0
      %p154 = por %p152, %p153
      %s155 = ssub.s32 %s32, %s39
      %p156 = scmp.eq.s32.totalorder %s155, 0
      %s158 = sadd.s32 %s157, 1
      %s159 = scalar_select %p156, %s157, %s158
      %p162 = pneg %p156
      %p163 = scmp.eq.s32.totalorder %s32, 9
      %p164 = por %p162, %p163
      %p165 = scmp.ne.s32.totalorder %s157, %s160
      %p166 = scmp.eq.s32.totalorder %s32, 0
      %p167 = por %p165, %p166
      %p168 = scmp.ne.s32.totalorder %s157, %s160
      %p169 = scmp.eq.s32.totalorder %s37, 9
      %p170 = por %p168, %p169
      %p171 = scmp.ne.s32.totalorder %s160, %s161
      %p172 = scmp.eq.s32.totalorder %s37, 0
      %p173 = por %p171, %p172
      %p174 = scmp.ne.s32.totalorder %s160, %s161
      %p175 = scmp.eq.s32.totalorder %s38, 9
      %p176 = por %p174, %p175
      %p178 = scmp.ne.s32.totalorder %s161, %s177
      %p179 = scmp.eq.s32.totalorder %s38, 0
      %p180 = por %p178, %p179
      %s181 = ssub.s32 %s32, %s39
      %p182 = scmp.eq.s32.totalorder %s181, 0
      %s184 = sadd.s32 %s183, 1
      %s185 = scalar_select %p182, %s183, %s184
      %p188 = pneg %p182
      %p189 = scmp.eq.s32.totalorder %s32, 9
      %p190 = por %p188, %p189
      %p191 = scmp.ne.s32.totalorder %s183, %s186
      %p192 = scmp.eq.s32.totalorder %s32, 0
      %p193 = por %p191, %p192
      %p194 = scmp.ne.s32.totalorder %s183, %s186
      %p195 = scmp.eq.s32.totalorder %s37, 9
      %p196 = por %p194, %p195
      %p197 = scmp.ne.s32.totalorder %s186, %s187
      %p198 = scmp.eq.s32.totalorder %s37, 0
      %p199 = por %p197, %p198
      %p200 = scmp.ne.s32.totalorder %s186, %s187
      %p201 = scmp.eq.s32.totalorder %s38, 9
      %p202 = por %p200, %p201
      %p204 = scmp.ne.s32.totalorder %s187, %s203
      %p205 = scmp.eq.s32.totalorder %s38, 0
      %p206 = por %p204, %p205
      %s207 = ssub.s32 %s32, %s39
      %p208 = scmp.eq.s32.totalorder %s207, 0
      %s210 = sadd.s32 %s209, 1
      %s211 = scalar_select %p208, %s209, %s210
      %p214 = pneg %p208
      %p215 = scmp.eq.s32.totalorder %s32, 9
      %p216 = por %p214, %p215
      %p217 = scmp.ne.s32.totalorder %s209, %s212
      %p218 = scmp.eq.s32.totalorder %s32, 0
      %p219 = por %p217, %p218
      %p220 = scmp.ne.s32.totalorder %s209, %s212
      %p221 = scmp.eq.s32.totalorder %s37, 9
      %p222 = por %p220, %p221
      %p223 = scmp.ne.s32.totalorder %s212, %s213
      %p224 = scmp.eq.s32.totalorder %s37, 0
      %p225 = por %p223, %p224
      %p226 = scmp.ne.s32.totalorder %s212, %s213
      %p227 = scmp.eq.s32.totalorder %s38, 9
      %p228 = por %p226, %p227
      %p230 = scmp.ne.s32.totalorder %s213, %s229
      %p231 = scmp.eq.s32.totalorder %s38, 0
      %p232 = por %p230, %p231
      %s233 = ssub.s32 %s32, %s39
      %p234 = scmp.eq.s32.totalorder %s233, 0
      %s236 = sadd.s32 %s235, 1
      %s237 = scalar_select %p234, %s235, %s236
      %p240 = pneg %p234
      %p241 = scmp.eq.s32.totalorder %s32, 9
      %p242 = por %p240, %p241
      %p243 = scmp.ne.s32.totalorder %s235, %s238
      %p244 = scmp.eq.s32.totalorder %s32, 0
      %p245 = por %p243, %p244
      %p246 = scmp.ne.s32.totalorder %s235, %s238
      %p247 = scmp.eq.s32.totalorder %s37, 9
      %p248 = por %p246, %p247
      %p249 = scmp.ne.s32.totalorder %s238, %s239
      %p250 = scmp.eq.s32.totalorder %s37, 0
      %p251 = por %p249, %p250
      %p252 = scmp.ne.s32.totalorder %s238, %s239
      %p253 = scmp.eq.s32.totalorder %s38, 9
      %p254 = por %p252, %p253
      %p256 = scmp.ne.s32.totalorder %s239, %s255
      %p257 = scmp.eq.s32.totalorder %s38, 0
      %p258 = por %p256, %p257
      %s260 = sadd.s32 %s259, 1
      %p263 = scmp.eq.s32.totalorder %s32, 9
      %p264 = scmp.ne.s32.totalorder %s259, %s261
      %p265 = scmp.eq.s32.totalorder %s32, 0
      %p266 = por %p264, %p265
      %p267 = scmp.ne.s32.totalorder %s259, %s261
      %p268 = scmp.eq.s32.totalorder %s37, 9
      %p269 = por %p267, %p268
      %p270 = scmp.ne.s32.totalorder %s261, %s262
      %p271 = scmp.eq.s32.totalorder %s37, 0
      %p272 = por %p270, %p271
      %p273 = scmp.ne.s32.totalorder %s261, %s262
      %p274 = scmp.eq.s32.totalorder %s38, 9
      %p275 = por %p273, %p274
      %p277 = scmp.ne.s32.totalorder %s262, %s276
      %p278 = scmp.eq.s32.totalorder %s38, 0
      %p279 = por %p277, %p278
      %p280 = scmp.le.s32.totalorder 1, %s32
      %p281 = scmp.lt.s32.totalorder %s32, 11
      %p282 = pnand %p280, %p281
      %p283 = pneg %p282
      // Predicated region
      $region9: #{hifusion_apply.1} parent=5 // pred_check
        _
      $region10: #{hifusion_apply.1} parent=5 // pred_check_branch
        %285 = sbr.rel (%p282) target = $region12
      $region11: #{hifusion_apply.1} parent=5 // pred_region
        %s286 = ssub.s32 %s32, 1
        // Predicated region
        $region13: #{hifusion_apply.1} parent=11 // pred_check
          %p287 = pneg %p53
        $region14: #{hifusion_apply.1} parent=11 // pred_check_branch
          %289 = sbr.rel (%p287) target = $region16
        $region15: #{hifusion_apply.1} parent=11 // pred_region
          %s291 = ssub.s32 128, 128
          %292 = vsyncadd [#allocation6], %s291
          %s294 = sshll.u32 [#allocation5], 4
          %s295 = int_to_ptr.vmem [resolvable:$true] %s294
          %297 = dma.hbm_to_vmem [thread:$0]  %s1, 128, %s295, [#allocation6]
        $region16: #{hifusion_apply.1} parent=11 // pred_fallthru
          _
        // Predicated region
        $region17: #{hifusion_apply.1} parent=11 // pred_check
          %p298 = pneg %p74
        $region18: #{hifusion_apply.1} parent=11 // pred_check_branch
          %300 = sbr.rel (%p298) target = $region20
        $region19: #{hifusion_apply.1} parent=11 // pred_region
          %s302 = ssub.s32 128, 128
          %303 = vsyncadd [#allocation9], %s302
          %s305 = sshll.u32 [#allocation8], 4
          %s306 = int_to_ptr.vmem [resolvable:$true] %s305
          %308 = dma.hbm_to_vmem [thread:$0]  %s2, 128, %s306, [#allocation9]
        $region20: #{hifusion_apply.1} parent=11 // pred_fallthru
          _
        // Predicated region
        $region21: #{hifusion_apply.1} parent=11 // pred_check
          %p309 = pneg %p95
        $region22: #{hifusion_apply.1} parent=11 // pred_check_branch
          %311 = sbr.rel (%p309) target = $region24
        $region23: #{hifusion_apply.1} parent=11 // pred_region
          %s313 = ssub.s32 128, 128
          %314 = vsyncadd [#allocation9], %s313
          %s316 = sshll.u32 [#allocation10], 4
          %s317 = int_to_ptr.vmem [resolvable:$true] %s316
          %319 = dma.hbm_to_vmem [thread:$0]  %s3, 128, %s317, [#allocation9]
        $region24: #{hifusion_apply.1} parent=11 // pred_fallthru
          _
      $region12: #{hifusion_apply.1} parent=5 // pred_fallthru
        _
      %p320 = scmp.lt.s32.totalorder %s32, 10
      // Predicated region
      $region25: #{hifusion_apply.1} parent=5 // pred_check
        %p321 = pneg %p320
      $region26: #{hifusion_apply.1} parent=5 // pred_check_branch
        %323 = sbr.rel (%p321) target = $region28
      $region27: #{hifusion_apply.1} parent=5 // pred_region
        // Predicated region
        $region29: #{hifusion_apply.1} parent=27 // pred_check
          %p324 = pneg %p115
        $region30: #{hifusion_apply.1} parent=27 // pred_check_branch
          %326 = sbr.rel (%p324) target = $region32
        $region31: #{hifusion_apply.1} parent=27 // pred_region
          %s327 = sand.u32 %s32, 1
          %s328 = scalar_lea.sflag [#allocation12], %s327
          %s329 = sand.u32 %s105, 1
          %s330 = smul.addr %s329, 64
          %s331 = scalar_lea.vmem [#allocation11], %s330
          %s333 = ssub.s32 1024, 1024
          %334 = vsyncadd %s328, %s333
          %s335 = smul.addr %s32, 16
          %s336 = smul.addr %s335, 64
          %s337 = scalar_lea.hbm %s4, %s336
          %s338 = sshll.u32 %s331, 4
          %s339 = int_to_ptr.vmem [resolvable:$true] %s338
          %344 = dma.hbm_to_vmem [thread:$0]  %s337, 1024, %s339, %s328, 64, 64, 4
        $region32: #{hifusion_apply.1} parent=27 // pred_fallthru
          _
        // Predicated region
        $region33: #{hifusion_apply.1} parent=27 // pred_check
          %p345 = pneg %p141
        $region34: #{hifusion_apply.1} parent=27 // pred_check_branch
          %347 = sbr.rel (%p345) target = $region36
        $region35: #{hifusion_apply.1} parent=27 // pred_region
          %s348 = sand.u32 %s32, 1
          %s349 = scalar_lea.sflag [#allocation12], %s348
          %s350 = sand.u32 %s131, 1
          %s351 = smul.addr %s350, 64
          %s352 = scalar_lea.vmem [#allocation13], %s351
          %s354 = ssub.s32 1024, 1024
          %355 = vsyncadd %s349, %s354
          %s356 = smul.addr %s32, 16
          %s357 = smul.addr %s356, 64
          %s358 = scalar_lea.hbm %s5, %s357
          %s359 = sshll.u32 %s352, 4
          %s360 = int_to_ptr.vmem [resolvable:$true] %s359
          %365 = dma.hbm_to_vmem [thread:$0]  %s358, 1024, %s360, %s349, 64, 64, 4
        $region36: #{hifusion_apply.1} parent=27 // pred_fallthru
          _
        // Predicated region
        $region37: #{hifusion_apply.1} parent=27 // pred_check
          %p366 = pneg %p167
        $region38: #{hifusion_apply.1} parent=27 // pred_check_branch
          %368 = sbr.rel (%p366) target = $region40
        $region39: #{hifusion_apply.1} parent=27 // pred_region
          %s369 = sand.u32 %s32, 1
          %s370 = scalar_lea.sflag [#allocation15], %s369
          %s371 = sand.u32 %s157, 1
          %s372 = smul.addr %s371, 512
          %s373 = scalar_lea.vmem [#allocation14], %s372
          %s375 = ssub.s32 8192, 8192
          %376 = vsyncadd %s370, %s375
          %s377 = smul.addr %s32, 128
          %s378 = smul.addr %s377, 64
          %s379 = scalar_lea.hbm %s6, %s378
          %s380 = sshll.u32 %s373, 4
          %s381 = int_to_ptr.vmem [resolvable:$true] %s380
          %386 = dma.hbm_to_vmem [thread:$0]  %s379, 8192, %s381, %s370, 512, 512, 32
        $region40: #{hifusion_apply.1} parent=27 // pred_fallthru
          _
        // Predicated region
        $region41: #{hifusion_apply.1} parent=27 // pred_check
          %p387 = pneg %p193
        $region42: #{hifusion_apply.1} parent=27 // pred_check_branch
          %389 = sbr.rel (%p387) target = $region44
        $region43: #{hifusion_apply.1} parent=27 // pred_region
          %s390 = sand.u32 %s32, 1
          %s391 = scalar_lea.sflag [#allocation15], %s390
          %s392 = sand.u32 %s183, 1
          %s393 = smul.addr %s392, 512
          %s394 = scalar_lea.vmem [#allocation16], %s393
          %s396 = ssub.s32 8192, 8192
          %397 = vsyncadd %s391, %s396
          %s398 = smul.addr %s32, 128
          %s399 = smul.addr %s398, 64
          %s400 = scalar_lea.hbm %s7, %s399
          %s401 = sshll.u32 %s394, 4
          %s402 = int_to_ptr.vmem [resolvable:$true] %s401
          %407 = dma.hbm_to_vmem [thread:$0]  %s400, 8192, %s402, %s391, 64, 64, 4
        $region44: #{hifusion_apply.1} parent=27 // pred_fallthru
          _
        // Predicated region
        $region45: #{hifusion_apply.1} parent=27 // pred_check
          %p408 = pneg %p219
        $region46: #{hifusion_apply.1} parent=27 // pred_check_branch
          %410 = sbr.rel (%p408) target = $region48
        $region47: #{hifusion_apply.1} parent=27 // pred_region
          %p411 = scmp.lt.s32.totalorder %s32, 9
          %s412 = scalar_select %p411, %s32, 9
          %s413 = smul.addr %s412, 2
          %s414 = smul.addr %s413, 8
          %s415 = scalar_lea.vmem %s8, %s414
        $region48: #{hifusion_apply.1} parent=27 // pred_fallthru
          _
        // Predicated region
        $region49: #{hifusion_apply.1} parent=27 // pred_check
          %p416 = pneg %p245
        $region50: #{hifusion_apply.1} parent=27 // pred_check_branch
          %418 = sbr.rel (%p416) target = $region52
        $region51: #{hifusion_apply.1} parent=27 // pred_region
          %s419 = sand.u32 %s235, 1
          %s420 = scalar_lea.sflag [#allocation18], %s419
          %s421 = sand.u32 %s235, 1
          %s422 = smul.addr %s421, 8
          %s423 = scalar_lea.vmem [#allocation17], %s422
          %s425 = ssub.s32 128, 128
          %426 = vsyncadd %s420, %s425
          %s427 = smul.addr %s32, 8
          %s428 = smul.addr %s427, 16
          %s429 = scalar_lea.hbm %s9, %s428
          %s431 = sshll.u32 %s423, 4
          %s432 = int_to_ptr.vmem [resolvable:$true] %s431
          %434 = dma.hbm_to_vmem [thread:$0]  %s429, 128, %s432, %s420
        $region52: #{hifusion_apply.1} parent=27 // pred_fallthru
          _
      $region28: #{hifusion_apply.1} parent=5 // pred_fallthru
        _
      %p435 = scmp.le.s32.totalorder 1, %s32
      %p436 = scmp.lt.s32.totalorder %s32, 11
      %p437 = pnand %p435, %p436
      %p438 = pneg %p437
      // Predicated region
      $region53: #{hifusion_apply.1} parent=5 // pred_check
        _
      $region54: #{hifusion_apply.1} parent=5 // pred_check_branch
        %440 = sbr.rel (%p437) target = $region56
      $region55: #{hifusion_apply.1} parent=5 // pred_region
        %s441 = ssub.s32 %s32, 1
        // Predicated region
        $region57: #{hifusion_apply.1} parent=55 // pred_check
          %p442 = pneg %p53
        $region58: #{hifusion_apply.1} parent=55 // pred_check_branch
          %444 = sbr.rel (%p442) target = $region60
        $region59: #{hifusion_apply.1} parent=55 // pred_region
          %445 = dma.done [#allocation6], 128
        $region60: #{hifusion_apply.1} parent=55 // pred_fallthru
          _
        // Predicated region
        $region61: #{hifusion_apply.1} parent=55 // pred_check
          %p446 = pneg %p74
        $region62: #{hifusion_apply.1} parent=55 // pred_check_branch
          %448 = sbr.rel (%p446) target = $region64
        $region63: #{hifusion_apply.1} parent=55 // pred_region
          %449 = dma.done [#allocation9], 128
        $region64: #{hifusion_apply.1} parent=55 // pred_fallthru
          _
        // Predicated region
        $region65: #{hifusion_apply.1} parent=55 // pred_check
          %p450 = pneg %p95
        $region66: #{hifusion_apply.1} parent=55 // pred_check_branch
          %452 = sbr.rel (%p450) target = $region68
        $region67: #{hifusion_apply.1} parent=55 // pred_region
          %453 = dma.done [#allocation9], 128
        $region68: #{hifusion_apply.1} parent=55 // pred_fallthru
          _
        %s454 = sand.u32 %s37, 1
        %s455 = scalar_lea.sflag [#allocation12], %s454
        %s456 = sand.u32 %s108, 1
        %s457 = smul.addr %s456, 64
        %s458 = scalar_lea.vmem [#allocation11], %s457
        // Predicated region
        $region69: #{hifusion_apply.1} parent=55 // pred_check
          %p459 = pneg %p121
        $region70: #{hifusion_apply.1} parent=55 // pred_check_branch
          %461 = sbr.rel (%p459) target = $region72
        $region71: #{hifusion_apply.1} parent=55 // pred_region
          %462 = dma.done %s455, 1024
        $region72: #{hifusion_apply.1} parent=55 // pred_fallthru
          _
        %s463 = sand.u32 %s37, 1
        %s464 = scalar_lea.sflag [#allocation12], %s463
        %s465 = sand.u32 %s134, 1
        %s466 = smul.addr %s465, 64
        %s467 = scalar_lea.vmem [#allocation13], %s466
        // Predicated region
        $region73: #{hifusion_apply.1} parent=55 // pred_check
          %p468 = pneg %p147
        $region74: #{hifusion_apply.1} parent=55 // pred_check_branch
          %470 = sbr.rel (%p468) target = $region76
        $region75: #{hifusion_apply.1} parent=55 // pred_region
          %471 = dma.done %s464, 1024
        $region76: #{hifusion_apply.1} parent=55 // pred_fallthru
          _
        %s472 = sand.u32 %s37, 1
        %s473 = scalar_lea.sflag [#allocation15], %s472
        %s474 = sand.u32 %s160, 1
        %s475 = smul.addr %s474, 512
        %s476 = scalar_lea.vmem [#allocation14], %s475
        // Predicated region
        $region77: #{hifusion_apply.1} parent=55 // pred_check
          %p477 = pneg %p173
        $region78: #{hifusion_apply.1} parent=55 // pred_check_branch
          %479 = sbr.rel (%p477) target = $region80
        $region79: #{hifusion_apply.1} parent=55 // pred_region
          %480 = dma.done %s473, 8192
        $region80: #{hifusion_apply.1} parent=55 // pred_fallthru
          _
        %s481 = sand.u32 %s37, 1
        %s482 = scalar_lea.sflag [#allocation15], %s481
        %s483 = sand.u32 %s186, 1
        %s484 = smul.addr %s483, 512
        %s485 = scalar_lea.vmem [#allocation16], %s484
        // Predicated region
        $region81: #{hifusion_apply.1} parent=55 // pred_check
          %p486 = pneg %p199
        $region82: #{hifusion_apply.1} parent=55 // pred_check_branch
          %488 = sbr.rel (%p486) target = $region84
        $region83: #{hifusion_apply.1} parent=55 // pred_region
          %489 = dma.done %s482, 8192
        $region84: #{hifusion_apply.1} parent=55 // pred_fallthru
          _
        %s490 = sand.u32 %s238, 1
        %s491 = scalar_lea.sflag [#allocation18], %s490
        %s492 = sand.u32 %s238, 1
        %s493 = smul.addr %s492, 8
        %s494 = scalar_lea.vmem [#allocation17], %s493
        // Predicated region
        $region85: #{hifusion_apply.1} parent=55 // pred_check
          %p495 = pneg %p251
        $region86: #{hifusion_apply.1} parent=55 // pred_check_branch
          %497 = sbr.rel (%p495) target = $region88
        $region87: #{hifusion_apply.1} parent=55 // pred_region
          %498 = dma.done %s491, 128
        $region88: #{hifusion_apply.1} parent=55 // pred_fallthru
          _
        %p499 = pneg %p53
        %p500 = pneg %p50
        %p501 = pneg %p74
        %p502 = pneg %p71
        %p503 = pneg %p95
        %p504 = pneg %p92
        %s505 = sand.u32 %s37, 1
        %s506 = scalar_lea.sflag [#allocation12], %s505
        %s507 = sand.u32 %s108, 1
        %s508 = smul.addr %s507, 64
        %s509 = scalar_lea.vmem [#allocation11], %s508
        %p510 = pneg %p121
        %p511 = pneg %p118
        %s512 = sand.u32 %s37, 1
        %s513 = scalar_lea.sflag [#allocation12], %s512
        %s514 = sand.u32 %s134, 1
        %s515 = smul.addr %s514, 64
        %s516 = scalar_lea.vmem [#allocation13], %s515
        %p517 = pneg %p147
        %p518 = pneg %p144
        %s519 = sand.u32 %s37, 1
        %s520 = scalar_lea.sflag [#allocation15], %s519
        %s521 = sand.u32 %s160, 1
        %s522 = smul.addr %s521, 512
        %s523 = scalar_lea.vmem [#allocation14], %s522
        %p524 = pneg %p173
        %p525 = pneg %p170
        %s526 = sand.u32 %s37, 1
        %s527 = scalar_lea.sflag [#allocation15], %s526
        %s528 = sand.u32 %s186, 1
        %s529 = smul.addr %s528, 512
        %s530 = scalar_lea.vmem [#allocation16], %s529
        %p531 = pneg %p199
        %p532 = pneg %p196
        %p533 = scmp.lt.s32.totalorder %s37, 9
        %s534 = scalar_select %p533, %s37, 9
        %s535 = smul.addr %s534, 2
        %s536 = smul.addr %s535, 8
        %s537 = scalar_lea.vmem %s8, %s536
        %p538 = pneg %p225
        %p539 = pneg %p222
        %s540 = sand.u32 %s238, 1
        %s541 = scalar_lea.sflag [#allocation18], %s540
        %s542 = sand.u32 %s238, 1
        %s543 = smul.addr %s542, 8
        %s544 = scalar_lea.vmem [#allocation17], %s543
        %p545 = pneg %p251
        %p546 = pneg %p248
        %p547 = pneg %p272
        %p548 = pneg %p269
        %p549 = scmp.lt.s32.totalorder %s37, 9
        %s550 = scalar_select %p549, %s37, 9
        %s551 = smul.addr %s550, 2
        %s552 = smul.addr %s551, 8
        %s553 = scalar_lea.vmem %s8, %s552
        %p555 = scmp.eq.s32.totalorder %s37, 0
        // Predicated region
        $region89: #{hifusion_apply.1} parent=55 // pred_check
          %p556 = pneg %p555
        $region90: #{hifusion_apply.1} parent=55 // pred_check_branch
          %558 = sbr.rel (%p556) target = $region92
        $region91: #{hifusion_apply.1} parent=55 // pred_region
          %v559 = vld [vmem:[#allocation5] sm:$0xff]
          %560 = vst [vmem:[#allocation2] sm:$0xff] %v559
          %v561 = vld [vmem:[#allocation8] sm:$0xff]
          %s562 = scalar_lea.vmem [#allocation2], 8
          %563 = vst [vmem:[%s562] sm:$0xff] %v561
          %v564 = vld [vmem:[#allocation10] sm:$0xff]
          %s565 = scalar_lea.vmem [#allocation2], 16
          %566 = vst [vmem:[%s565] sm:$0xff] %v564
        $region92: #{hifusion_apply.1} parent=55 // pred_fallthru
          _
        %s567 = smul.u32 %s37, 128
        %s568 = sld [smem:[#allocation4 + %s567]]
        %s569 = sadd.s32 %s567, 1
        %s570 = sld [smem:[#allocation4 + %s569]]
        %s571 = sadd.s32 %s567, 2
        %s572 = sld [smem:[#allocation4 + %s571]]
        %s573 = sadd.s32 %s567, 3
        %s574 = sld [smem:[#allocation4 + %s573]]
        %s575 = smul.u32 %s568, 8
        %s576 = scalar_lea.vmem [#allocation2], %s575
        %v577 = vld [vmem:[%s576] sm:$0xff]
        %s578 = smul.u32 %s570, 8
        %s579 = scalar_lea.vmem [#allocation2], %s578
        %v580 = vld [vmem:[%s579] sm:$0xff]
        %v581 = vld [vmem:[%s553] sm:$0xff]
        %v582 = vld [vmem:[%s553 + $0x8] sm:$0x1]
        %v583 = vld [vmem:[%s494] sm:$0xff]
        %v584 = vpack.c.bf16 %v577, %v577
        %v585 = vld [vmem:[%s458] sm:$0xf]
        %v586 = vld [vmem:[%s458 + $0x4] sm:$0xf]
        %v587 = vld [vmem:[%s458 + $0x8] sm:$0xf]
        %v588 = vld [vmem:[%s458 + $0xc] sm:$0xf]
        %v589 = vld [vmem:[%s458 + $0x10] sm:$0xf]
        %v590 = vld [vmem:[%s458 + $0x14] sm:$0xf]
        %v591 = vld [vmem:[%s458 + $0x18] sm:$0xf]
        %v592 = vld [vmem:[%s458 + $0x1c] sm:$0xf]
        %v593 = vld [vmem:[%s458 + $0x20] sm:$0xf]
        %v594 = vld [vmem:[%s458 + $0x24] sm:$0xf]
        %v595 = vld [vmem:[%s458 + $0x28] sm:$0xf]
        %v596 = vld [vmem:[%s458 + $0x2c] sm:$0xf]
        %v597 = vld [vmem:[%s458 + $0x30] sm:$0xf]
        %v598 = vld [vmem:[%s458 + $0x34] sm:$0xf]
        %v599 = vld [vmem:[%s458 + $0x38] sm:$0xf]
        %v600 = vld [vmem:[%s458 + $0x3c] sm:$0xf]
        %v601 = vlaneseq
        %v602 = vshrl.u32 %v601, 7
        %v603 = vsub.s32 0, %v602
        %v604 = vrot.slane %v581, %v603
        %v621 = vunpack.c.l.b16 %v585
        %v622 = vunpack.c.l.b16 %v586
        %v623 = vunpack.c.l.b16 %v587
        %v624 = vunpack.c.l.b16 %v588
        %v625 = vunpack.c.l.b16 %v589
        %v626 = vunpack.c.l.b16 %v590
        %v627 = vunpack.c.l.b16 %v591
        %v628 = vunpack.c.l.b16 %v592
        %v629 = vunpack.c.l.b16 %v593
        %v630 = vunpack.c.l.b16 %v594
        %v631 = vunpack.c.l.b16 %v595
        %v632 = vunpack.c.l.b16 %v596
        %v633 = vunpack.c.l.b16 %v597
        %v634 = vunpack.c.l.b16 %v598
        %v635 = vunpack.c.l.b16 %v599
        %v636 = vunpack.c.l.b16 %v600
        %v637 = vpack.c.b16 %v622, %v621
        %v638 = vpack.c.b16 %v624, %v623
        %v639 = vpack.c.b16 %v626, %v625
        %v640 = vpack.c.b16 %v628, %v627
        %v641 = vpack.c.b16 %v630, %v629
        %v642 = vpack.c.b16 %v632, %v631
        %v643 = vpack.c.b16 %v634, %v633
        %v644 = vpack.c.b16 %v636, %v635
        %653 = vmatprep.subr.bf16.mxu0 0
        %654 = vmatpush1.bf16.msra.mxu0 %v644
        %655 = vmatprep.subr.bf16.mxu0 0
        %656 = vmatpush1.bf16.msra.mxu0 %v643
        %657 = vmatprep.subr.bf16.mxu0 0
        %658 = vmatpush1.bf16.msra.mxu0 %v642
        %659 = vmatprep.subr.bf16.mxu0 0
        %660 = vmatpush1.bf16.msra.mxu0 %v641
        %661 = vmatprep.subr.bf16.mxu0 0
        %662 = vmatpush1.bf16.msra.mxu0 %v640
        %663 = vmatprep.subr.bf16.mxu0 0
        %664 = vmatpush1.bf16.msra.mxu0 %v639
        %665 = vmatprep.subr.bf16.mxu0 0
        %666 = vmatpush1.bf16.msra.mxu0 %v638
        %667 = vmatprep.subr.bf16.mxu0 0
        %668 = vmatpush1.bf16.msra.mxu0 %v637
        %669 = vmatprep.subr.bf16.mxu0 0
        %670 = vmatpush2.bf16.msra.mxu0 0
        %671 = vmatprep.subr.bf16.mxu0 0
        %672 = vmatpush2.bf16.msra.mxu0 0
        %673 = vmatprep.subr.bf16.mxu0 0
        %674 = vmatpush2.bf16.msra.mxu0 0
        %675 = vmatprep.subr.bf16.mxu0 0
        %676 = vmatpush2.bf16.msra.mxu0 0
        %677 = vmatprep.subr.bf16.mxu0 0
        %678 = vmatpush2.bf16.msra.mxu0 0
        %679 = vmatprep.subr.bf16.mxu0 0
        %680 = vmatpush2.bf16.msra.mxu0 0
        %681 = vmatprep.subr.bf16.mxu0 0
        %682 = vmatpush2.bf16.msra.mxu0 0
        %683 = vmatprep.subr.bf16.mxu0 0
        %684 = vmatpush2.bf16.msra.mxu0 0
        %685 = vmatprep.mubr.bf16.mxu0 0
        %686 = vmatmul.mubr.bf16.gmra.mxu0 %v584
        %v687 = vpop.f32.mrf.mxu0
        %v688 = vadd.f32 %v604, %v687
        %v689 = vpop.f32.mrf.mxu0
        %v690 = vpop.f32.mrf.mxu0
        %v691 = vpop.f32.mrf.mxu0
        %692 = vdwg.mxu0
        %v693 = vadd.f32 %v577, %v688
        %694 = vadd.xlane.f32.xlu0 %v693
        %v695 = vpop.xlane.xlu0 %694
        %v696 = vmul.f32 %v693, %v693
        %697 = vadd.xlane.f32.xlu0 %v696
        %v698 = vpop.xlane.xlu0 %697
        %v699 = vmul.f32 %v695, 0.0078125
        %v700 = vmul.f32 %v698, 0.0078125
        %v701 = vmul.f32 %v699, %v699
        %v702 = vsub.f32 %v700, %v701
        %v703 = vsub.f32 %v693, %v699
        %v704 = vadd.f32 %v702, 1e-06
        %v705 = vrsqrt.pop %v704
        %v706 = vmul.f32 %v703, %v705
        %v707 = vlaneseq
        %v708 = vshrl.u32 %v707, 7
        %v709 = vsub.s32 3, %v708
        %v710 = vrot.slane %v581, %v709
        %v711 = vmul.f32 %v706, %v710
        %v712 = vlaneseq
        %v713 = vshrl.u32 %v712, 7
        %v714 = vsub.s32 4, %v713
        %v715 = vrot.slane %v581, %v714
        %v716 = vadd.f32 %v711, %v715
        %v717 = vpack.c.bf16 %v580, %v580
        %v718 = vld [vmem:[%s467] sm:$0xf]
        %v719 = vld [vmem:[%s467 + $0x4] sm:$0xf]
        %v720 = vld [vmem:[%s467 + $0x8] sm:$0xf]
        %v721 = vld [vmem:[%s467 + $0xc] sm:$0xf]
        %v722 = vld [vmem:[%s467 + $0x10] sm:$0xf]
        %v723 = vld [vmem:[%s467 + $0x14] sm:$0xf]
        %v724 = vld [vmem:[%s467 + $0x18] sm:$0xf]
        %v725 = vld [vmem:[%s467 + $0x1c] sm:$0xf]
        %v726 = vld [vmem:[%s467 + $0x20] sm:$0xf]
        %v727 = vld [vmem:[%s467 + $0x24] sm:$0xf]
        %v728 = vld [vmem:[%s467 + $0x28] sm:$0xf]
        %v729 = vld [vmem:[%s467 + $0x2c] sm:$0xf]
        %v730 = vld [vmem:[%s467 + $0x30] sm:$0xf]
        %v731 = vld [vmem:[%s467 + $0x34] sm:$0xf]
        %v732 = vld [vmem:[%s467 + $0x38] sm:$0xf]
        %v733 = vld [vmem:[%s467 + $0x3c] sm:$0xf]
        %v734 = vlaneseq
        %v735 = vshrl.u32 %v734, 7
        %v736 = vsub.s32 1, %v735
        %v737 = vrot.slane %v581, %v736
        %v754 = vunpack.c.l.b16 %v718
        %v755 = vunpack.c.l.b16 %v719
        %v756 = vunpack.c.l.b16 %v720
        %v757 = vunpack.c.l.b16 %v721
        %v758 = vunpack.c.l.b16 %v722
        %v759 = vunpack.c.l.b16 %v723
        %v760 = vunpack.c.l.b16 %v724
        %v761 = vunpack.c.l.b16 %v725
        %v762 = vunpack.c.l.b16 %v726
        %v763 = vunpack.c.l.b16 %v727
        %v764 = vunpack.c.l.b16 %v728
        %v765 = vunpack.c.l.b16 %v729
        %v766 = vunpack.c.l.b16 %v730
        %v767 = vunpack.c.l.b16 %v731
        %v768 = vunpack.c.l.b16 %v732
        %v769 = vunpack.c.l.b16 %v733
        %v770 = vpack.c.b16 %v755, %v754
        %v771 = vpack.c.b16 %v757, %v756
        %v772 = vpack.c.b16 %v759, %v758
        %v773 = vpack.c.b16 %v761, %v760
        %v774 = vpack.c.b16 %v763, %v762
        %v775 = vpack.c.b16 %v765, %v764
        %v776 = vpack.c.b16 %v767, %v766
        %v777 = vpack.c.b16 %v769, %v768
        %786 = vmatprep.subr.bf16.mxu0 0
        %787 = vmatpush1.bf16.msra.mxu0 %v777
        %788 = vmatprep.subr.bf16.mxu0 0
        %789 = vmatpush1.bf16.msra.mxu0 %v776
        %790 = vmatprep.subr.bf16.mxu0 0
        %791 = vmatpush1.bf16.msra.mxu0 %v775
        %792 = vmatprep.subr.bf16.mxu0 0
        %793 = vmatpush1.bf16.msra.mxu0 %v774
        %794 = vmatprep.subr.bf16.mxu0 0
        %795 = vmatpush1.bf16.msra.mxu0 %v773
        %796 = vmatprep.subr.bf16.mxu0 0
        %797 = vmatpush1.bf16.msra.mxu0 %v772
        %798 = vmatprep.subr.bf16.mxu0 0
        %799 = vmatpush1.bf16.msra.mxu0 %v771
        %800 = vmatprep.subr.bf16.mxu0 0
        %801 = vmatpush1.bf16.msra.mxu0 %v770
        %802 = vmatprep.subr.bf16.mxu0 0
        %803 = vmatpush2.bf16.msra.mxu0 0
        %804 = vmatprep.subr.bf16.mxu0 0
        %805 = vmatpush2.bf16.msra.mxu0 0
        %806 = vmatprep.subr.bf16.mxu0 0
        %807 = vmatpush2.bf16.msra.mxu0 0
        %808 = vmatprep.subr.bf16.mxu0 0
        %809 = vmatpush2.bf16.msra.mxu0 0
        %810 = vmatprep.subr.bf16.mxu0 0
        %811 = vmatpush2.bf16.msra.mxu0 0
        %812 = vmatprep.subr.bf16.mxu0 0
        %813 = vmatpush2.bf16.msra.mxu0 0
        %814 = vmatprep.subr.bf16.mxu0 0
        %815 = vmatpush2.bf16.msra.mxu0 0
        %816 = vmatprep.subr.bf16.mxu0 0
        %817 = vmatpush2.bf16.msra.mxu0 0
        %818 = vmatprep.mubr.bf16.mxu0 0
        %819 = vmatmul.mubr.bf16.gmra.mxu0 %v717
        %v820 = vpop.f32.mrf.mxu0
        %v821 = vadd.f32 %v737, %v820
        %v822 = vpop.f32.mrf.mxu0
        %v823 = vpop.f32.mrf.mxu0
        %v824 = vpop.f32.mrf.mxu0
        %825 = vdwg.mxu0
        %v826 = vadd.f32 %v716, %v821
        %827 = vadd.xlane.f32.xlu0 %v826
        %v828 = vpop.xlane.xlu0 %827
        %v829 = vmul.f32 %v826, %v826
        %830 = vadd.xlane.f32.xlu0 %v829
        %v831 = vpop.xlane.xlu0 %830
        %v832 = vmul.f32 %v828, 0.0078125
        %v833 = vmul.f32 %v831, 0.0078125
        %v834 = vmul.f32 %v832, %v832
        %v835 = vsub.f32 %v833, %v834
        %v836 = vsub.f32 %v826, %v832
        %v837 = vadd.f32 %v835, 1e-06
        %v838 = vrsqrt.pop %v837
        %v839 = vmul.f32 %v836, %v838
        %v840 = vlaneseq
        %v841 = vshrl.u32 %v840, 7
        %v842 = vsub.s32 5, %v841
        %v843 = vrot.slane %v581, %v842
        %v844 = vmul.f32 %v839, %v843
        %v845 = vlaneseq
        %v846 = vshrl.u32 %v845, 7
        %v847 = vsub.s32 6, %v846
        %v848 = vrot.slane %v581, %v847
        %v849 = vadd.f32 %v844, %v848
        %v850 = vpack.c.bf16 %v849, %v849
        %v851 = vld [vmem:[%s476] sm:$0xff]
        %v852 = vld [vmem:[%s476 + $0x8] sm:$0xff]
        %v853 = vld [vmem:[%s476 + $0x10] sm:$0xff]
        %v854 = vld [vmem:[%s476 + $0x18] sm:$0xff]
        %v855 = vld [vmem:[%s476 + $0x20] sm:$0xff]
        %v856 = vld [vmem:[%s476 + $0x28] sm:$0xff]
        %v857 = vld [vmem:[%s476 + $0x30] sm:$0xff]
        %v858 = vld [vmem:[%s476 + $0x38] sm:$0xff]
        %v859 = vld [vmem:[%s476 + $0x40] sm:$0xff]
        %v860 = vld [vmem:[%s476 + $0x48] sm:$0xff]
        %v861 = vld [vmem:[%s476 + $0x50] sm:$0xff]
        %v862 = vld [vmem:[%s476 + $0x58] sm:$0xff]
        %v863 = vld [vmem:[%s476 + $0x60] sm:$0xff]
        %v864 = vld [vmem:[%s476 + $0x68] sm:$0xff]
        %v865 = vld [vmem:[%s476 + $0x70] sm:$0xff]
        %v866 = vld [vmem:[%s476 + $0x78] sm:$0xff]
        %v867 = vld [vmem:[%s476 + $0x80] sm:$0xff]
        %v868 = vld [vmem:[%s476 + $0x88] sm:$0xff]
        %v869 = vld [vmem:[%s476 + $0x90] sm:$0xff]
        %v870 = vld [vmem:[%s476 + $0x98] sm:$0xff]
        %v871 = vld [vmem:[%s476 + $0xa0] sm:$0xff]
        %v872 = vld [vmem:[%s476 + $0xa8] sm:$0xff]
        %v873 = vld [vmem:[%s476 + $0xb0] sm:$0xff]
        %v874 = vld [vmem:[%s476 + $0xb8] sm:$0xff]
        %v875 = vld [vmem:[%s476 + $0xc0] sm:$0xff]
        %v876 = vld [vmem:[%s476 + $0xc8] sm:$0xff]
        %v877 = vld [vmem:[%s476 + $0xd0] sm:$0xff]
        %v878 = vld [vmem:[%s476 + $0xd8] sm:$0xff]
        %v879 = vld [vmem:[%s476 + $0xe0] sm:$0xff]
        %v880 = vld [vmem:[%s476 + $0xe8] sm:$0xff]
        %v881 = vld [vmem:[%s476 + $0xf0] sm:$0xff]
        %v882 = vld [vmem:[%s476 + $0xf8] sm:$0xff]
        %v883 = vld [vmem:[%s476 + $0x100] sm:$0xff]
        %v884 = vld [vmem:[%s476 + $0x108] sm:$0xff]
        %v885 = vld [vmem:[%s476 + $0x110] sm:$0xff]
        %v886 = vld [vmem:[%s476 + $0x118] sm:$0xff]
        %v887 = vld [vmem:[%s476 + $0x120] sm:$0xff]
        %v888 = vld [vmem:[%s476 + $0x128] sm:$0xff]
        %v889 = vld [vmem:[%s476 + $0x130] sm:$0xff]
        %v890 = vld [vmem:[%s476 + $0x138] sm:$0xff]
        %v891 = vld [vmem:[%s476 + $0x140] sm:$0xff]
        %v892 = vld [vmem:[%s476 + $0x148] sm:$0xff]
        %v893 = vld [vmem:[%s476 + $0x150] sm:$0xff]
        %v894 = vld [vmem:[%s476 + $0x158] sm:$0xff]
        %v895 = vld [vmem:[%s476 + $0x160] sm:$0xff]
        %v896 = vld [vmem:[%s476 + $0x168] sm:$0xff]
        %v897 = vld [vmem:[%s476 + $0x170] sm:$0xff]
        %v898 = vld [vmem:[%s476 + $0x178] sm:$0xff]
        %v899 = vld [vmem:[%s476 + $0x180] sm:$0xff]
        %v900 = vld [vmem:[%s476 + $0x188] sm:$0xff]
        %v901 = vld [vmem:[%s476 + $0x190] sm:$0xff]
        %v902 = vld [vmem:[%s476 + $0x198] sm:$0xff]
        %v903 = vld [vmem:[%s476 + $0x1a0] sm:$0xff]
        %v904 = vld [vmem:[%s476 + $0x1a8] sm:$0xff]
        %v905 = vld [vmem:[%s476 + $0x1b0] sm:$0xff]
        %v906 = vld [vmem:[%s476 + $0x1b8] sm:$0xff]
        %v907 = vld [vmem:[%s476 + $0x1c0] sm:$0xff]
        %v908 = vld [vmem:[%s476 + $0x1c8] sm:$0xff]
        %v909 = vld [vmem:[%s476 + $0x1d0] sm:$0xff]
        %v910 = vld [vmem:[%s476 + $0x1d8] sm:$0xff]
        %v911 = vld [vmem:[%s476 + $0x1e0] sm:$0xff]
        %v912 = vld [vmem:[%s476 + $0x1e8] sm:$0xff]
        %v913 = vld [vmem:[%s476 + $0x1f0] sm:$0xff]
        %v914 = vld [vmem:[%s476 + $0x1f8] sm:$0xff]
        %v916 = vlaneseq
        %v917 = vshrl.u32 %v916, 7
        %v918 = vsub.s32 0, %v917
        %v919 = vrot.slane %v583, %v918
        %v920 = vlaneseq
        %v921 = vshrl.u32 %v920, 7
        %v922 = vsub.s32 1, %v921
        %v923 = vrot.slane %v583, %v922
        %v924 = vlaneseq
        %v925 = vshrl.u32 %v924, 7
        %v926 = vsub.s32 2, %v925
        %v927 = vrot.slane %v583, %v926
        %v928 = vlaneseq
        %v929 = vshrl.u32 %v928, 7
        %v930 = vsub.s32 3, %v929
        %v931 = vrot.slane %v583, %v930
        %v932 = vlaneseq
        %v933 = vshrl.u32 %v932, 7
        %v934 = vsub.s32 4, %v933
        %v935 = vrot.slane %v583, %v934
        %v936 = vlaneseq
        %v937 = vshrl.u32 %v936, 7
        %v938 = vsub.s32 5, %v937
        %v939 = vrot.slane %v583, %v938
        %v940 = vlaneseq
        %v941 = vshrl.u32 %v940, 7
        %v942 = vsub.s32 6, %v941
        %v943 = vrot.slane %v583, %v942
        %v944 = vlaneseq
        %v945 = vshrl.u32 %v944, 7
        %v946 = vsub.s32 7, %v945
        %v947 = vrot.slane %v583, %v946
        %v1020 = vunpack.c.l.b16 %v851
        %v1021 = vunpack.c.h.b16 %v851
        %v1022 = vunpack.c.l.b16 %v852
        %v1023 = vunpack.c.h.b16 %v852
        %v1024 = vunpack.c.l.b16 %v853
        %v1025 = vunpack.c.h.b16 %v853
        %v1026 = vunpack.c.l.b16 %v854
        %v1027 = vunpack.c.h.b16 %v854
        %v1028 = vunpack.c.l.b16 %v855
        %v1029 = vunpack.c.h.b16 %v855
        %v1030 = vunpack.c.l.b16 %v856
        %v1031 = vunpack.c.h.b16 %v856
        %v1032 = vunpack.c.l.b16 %v857
        %v1033 = vunpack.c.h.b16 %v857
        %v1034 = vunpack.c.l.b16 %v858
        %v1035 = vunpack.c.h.b16 %v858
        %v1036 = vunpack.c.l.b16 %v859
        %v1037 = vunpack.c.h.b16 %v859
        %v1038 = vunpack.c.l.b16 %v860
        %v1039 = vunpack.c.h.b16 %v860
        %v1040 = vunpack.c.l.b16 %v861
        %v1041 = vunpack.c.h.b16 %v861
        %v1042 = vunpack.c.l.b16 %v862
        %v1043 = vunpack.c.h.b16 %v862
        %v1044 = vunpack.c.l.b16 %v863
        %v1045 = vunpack.c.h.b16 %v863
        %v1046 = vunpack.c.l.b16 %v864
        %v1047 = vunpack.c.h.b16 %v864
        %v1048 = vunpack.c.l.b16 %v865
        %v1049 = vunpack.c.h.b16 %v865
        %v1050 = vunpack.c.l.b16 %v866
        %v1051 = vunpack.c.h.b16 %v866
        %v1052 = vunpack.c.l.b16 %v867
        %v1053 = vunpack.c.h.b16 %v867
        %v1054 = vunpack.c.l.b16 %v868
        %v1055 = vunpack.c.h.b16 %v868
        %v1056 = vunpack.c.l.b16 %v869
        %v1057 = vunpack.c.h.b16 %v869
        %v1058 = vunpack.c.l.b16 %v870
        %v1059 = vunpack.c.h.b16 %v870
        %v1060 = vunpack.c.l.b16 %v871
        %v1061 = vunpack.c.h.b16 %v871
        %v1062 = vunpack.c.l.b16 %v872
        %v1063 = vunpack.c.h.b16 %v872
        %v1064 = vunpack.c.l.b16 %v873
        %v1065 = vunpack.c.h.b16 %v873
        %v1066 = vunpack.c.l.b16 %v874
        %v1067 = vunpack.c.h.b16 %v874
        %v1068 = vunpack.c.l.b16 %v875
        %v1069 = vunpack.c.h.b16 %v875
        %v1070 = vunpack.c.l.b16 %v876
        %v1071 = vunpack.c.h.b16 %v876
        %v1072 = vunpack.c.l.b16 %v877
        %v1073 = vunpack.c.h.b16 %v877
        %v1074 = vunpack.c.l.b16 %v878
        %v1075 = vunpack.c.h.b16 %v878
        %v1076 = vunpack.c.l.b16 %v879
        %v1077 = vunpack.c.h.b16 %v879
        %v1078 = vunpack.c.l.b16 %v880
        %v1079 = vunpack.c.h.b16 %v880
        %v1080 = vunpack.c.l.b16 %v881
        %v1081 = vunpack.c.h.b16 %v881
        %v1082 = vunpack.c.l.b16 %v882
        %v1083 = vunpack.c.h.b16 %v882
        %v1084 = vunpack.c.l.b16 %v883
        %v1085 = vunpack.c.h.b16 %v883
        %v1086 = vunpack.c.l.b16 %v884
        %v1087 = vunpack.c.h.b16 %v884
        %v1088 = vunpack.c.l.b16 %v885
        %v1089 = vunpack.c.h.b16 %v885
        %v1090 = vunpack.c.l.b16 %v886
        %v1091 = vunpack.c.h.b16 %v886
        %v1092 = vunpack.c.l.b16 %v887
        %v1093 = vunpack.c.h.b16 %v887
        %v1094 = vunpack.c.l.b16 %v888
        %v1095 = vunpack.c.h.b16 %v888
        %v1096 = vunpack.c.l.b16 %v889
        %v1097 = vunpack.c.h.b16 %v889
        %v1098 = vunpack.c.l.b16 %v890
        %v1099 = vunpack.c.h.b16 %v890
        %v1100 = vunpack.c.l.b16 %v891
        %v1101 = vunpack.c.h.b16 %v891
        %v1102 = vunpack.c.l.b16 %v892
        %v1103 = vunpack.c.h.b16 %v892
        %v1104 = vunpack.c.l.b16 %v893
        %v1105 = vunpack.c.h.b16 %v893
        %v1106 = vunpack.c.l.b16 %v894
        %v1107 = vunpack.c.h.b16 %v894
        %v1108 = vunpack.c.l.b16 %v895
        %v1109 = vunpack.c.h.b16 %v895
        %v1110 = vunpack.c.l.b16 %v896
        %v1111 = vunpack.c.h.b16 %v896
        %v1112 = vunpack.c.l.b16 %v897
        %v1113 = vunpack.c.h.b16 %v897
        %v1114 = vunpack.c.l.b16 %v898
        %v1115 = vunpack.c.h.b16 %v898
        %v1116 = vunpack.c.l.b16 %v899
        %v1117 = vunpack.c.h.b16 %v899
        %v1118 = vunpack.c.l.b16 %v900
        %v1119 = vunpack.c.h.b16 %v900
        %v1120 = vunpack.c.l.b16 %v901
        %v1121 = vunpack.c.h.b16 %v901
        %v1122 = vunpack.c.l.b16 %v902
        %v1123 = vunpack.c.h.b16 %v902
        %v1124 = vunpack.c.l.b16 %v903
        %v1125 = vunpack.c.h.b16 %v903
        %v1126 = vunpack.c.l.b16 %v904
        %v1127 = vunpack.c.h.b16 %v904
        %v1128 = vunpack.c.l.b16 %v905
        %v1129 = vunpack.c.h.b16 %v905
        %v1130 = vunpack.c.l.b16 %v906
        %v1131 = vunpack.c.h.b16 %v906
        %v1132 = vunpack.c.l.b16 %v907
        %v1133 = vunpack.c.h.b16 %v907
        %v1134 = vunpack.c.l.b16 %v908
        %v1135 = vunpack.c.h.b16 %v908
        %v1136 = vunpack.c.l.b16 %v909
        %v1137 = vunpack.c.h.b16 %v909
        %v1138 = vunpack.c.l.b16 %v910
        %v1139 = vunpack.c.h.b16 %v910
        %v1140 = vunpack.c.l.b16 %v911
        %v1141 = vunpack.c.h.b16 %v911
        %v1142 = vunpack.c.l.b16 %v912
        %v1143 = vunpack.c.h.b16 %v912
        %v1144 = vunpack.c.l.b16 %v913
        %v1145 = vunpack.c.h.b16 %v913
        %v1146 = vunpack.c.l.b16 %v914
        %v1147 = vunpack.c.h.b16 %v914
        %v1148 = vpack.c.b16 %v1028, %v1020
        %v1149 = vpack.c.b16 %v1029, %v1021
        %v1150 = vpack.c.b16 %v1030, %v1022
        %v1151 = vpack.c.b16 %v1031, %v1023
        %v1152 = vpack.c.b16 %v1032, %v1024
        %v1153 = vpack.c.b16 %v1033, %v1025
        %v1154 = vpack.c.b16 %v1034, %v1026
        %v1155 = vpack.c.b16 %v1035, %v1027
        %v1156 = vpack.c.b16 %v1044, %v1036
        %v1157 = vpack.c.b16 %v1045, %v1037
        %v1158 = vpack.c.b16 %v1046, %v1038
        %v1159 = vpack.c.b16 %v1047, %v1039
        %v1160 = vpack.c.b16 %v1048, %v1040
        %v1161 = vpack.c.b16 %v1049, %v1041
        %v1162 = vpack.c.b16 %v1050, %v1042
        %v1163 = vpack.c.b16 %v1051, %v1043
        %v1164 = vpack.c.b16 %v1060, %v1052
        %v1165 = vpack.c.b16 %v1061, %v1053
        %v1166 = vpack.c.b16 %v1062, %v1054
        %v1167 = vpack.c.b16 %v1063, %v1055
        %v1168 = vpack.c.b16 %v1064, %v1056
        %v1169 = vpack.c.b16 %v1065, %v1057
        %v1170 = vpack.c.b16 %v1066, %v1058
        %v1171 = vpack.c.b16 %v1067, %v1059
        %v1172 = vpack.c.b16 %v1076, %v1068
        %v1173 = vpack.c.b16 %v1077, %v1069
        %v1174 = vpack.c.b16 %v1078, %v1070
        %v1175 = vpack.c.b16 %v1079, %v1071
        %v1176 = vpack.c.b16 %v1080, %v1072
        %v1177 = vpack.c.b16 %v1081, %v1073
        %v1178 = vpack.c.b16 %v1082, %v1074
        %v1179 = vpack.c.b16 %v1083, %v1075
        %v1180 = vpack.c.b16 %v1092, %v1084
        %v1181 = vpack.c.b16 %v1093, %v1085
        %v1182 = vpack.c.b16 %v1094, %v1086
        %v1183 = vpack.c.b16 %v1095, %v1087
        %v1184 = vpack.c.b16 %v1096, %v1088
        %v1185 = vpack.c.b16 %v1097, %v1089
        %v1186 = vpack.c.b16 %v1098, %v1090
        %v1187 = vpack.c.b16 %v1099, %v1091
        %v1188 = vpack.c.b16 %v1108, %v1100
        %v1189 = vpack.c.b16 %v1109, %v1101
        %v1190 = vpack.c.b16 %v1110, %v1102
        %v1191 = vpack.c.b16 %v1111, %v1103
        %v1192 = vpack.c.b16 %v1112, %v1104
        %v1193 = vpack.c.b16 %v1113, %v1105
        %v1194 = vpack.c.b16 %v1114, %v1106
        %v1195 = vpack.c.b16 %v1115, %v1107
        %v1196 = vpack.c.b16 %v1124, %v1116
        %v1197 = vpack.c.b16 %v1125, %v1117
        %v1198 = vpack.c.b16 %v1126, %v1118
        %v1199 = vpack.c.b16 %v1127, %v1119
        %v1200 = vpack.c.b16 %v1128, %v1120
        %v1201 = vpack.c.b16 %v1129, %v1121
        %v1202 = vpack.c.b16 %v1130, %v1122
        %v1203 = vpack.c.b16 %v1131, %v1123
        %v1204 = vpack.c.b16 %v1140, %v1132
        %v1205 = vpack.c.b16 %v1141, %v1133
        %v1206 = vpack.c.b16 %v1142, %v1134
        %v1207 = vpack.c.b16 %v1143, %v1135
        %v1208 = vpack.c.b16 %v1144, %v1136
        %v1209 = vpack.c.b16 %v1145, %v1137
        %v1210 = vpack.c.b16 %v1146, %v1138
        %v1211 = vpack.c.b16 %v1147, %v1139
        %1276 = vmatprep.subr.bf16.mxu0 %v1205
        %1277 = vmatpush1.bf16.msra.mxu0 %v1204
        %1278 = vmatprep.subr.bf16.mxu0 %v1197
        %1279 = vmatpush1.bf16.msra.mxu0 %v1196
        %1280 = vmatprep.subr.bf16.mxu0 %v1189
        %1281 = vmatpush1.bf16.msra.mxu0 %v1188
        %1282 = vmatprep.subr.bf16.mxu0 %v1181
        %1283 = vmatpush1.bf16.msra.mxu0 %v1180
        %1284 = vmatprep.subr.bf16.mxu0 %v1173
        %1285 = vmatpush1.bf16.msra.mxu0 %v1172
        %1286 = vmatprep.subr.bf16.mxu0 %v1165
        %1287 = vmatpush1.bf16.msra.mxu0 %v1164
        %1288 = vmatprep.subr.bf16.mxu0 %v1157
        %1289 = vmatpush1.bf16.msra.mxu0 %v1156
        %1290 = vmatprep.subr.bf16.mxu0 %v1149
        %1291 = vmatpush1.bf16.msra.mxu0 %v1148
        %1292 = vmatprep.subr.bf16.mxu0 0
        %1293 = vmatpush2.bf16.msra.mxu0 0
        %1294 = vmatprep.subr.bf16.mxu0 0
        %1295 = vmatpush2.bf16.msra.mxu0 0
        %1296 = vmatprep.subr.bf16.mxu0 0
        %1297 = vmatpush2.bf16.msra.mxu0 0
        %1298 = vmatprep.subr.bf16.mxu0 0
        %1299 = vmatpush2.bf16.msra.mxu0 0
        %1300 = vmatprep.subr.bf16.mxu0 0
        %1301 = vmatpush2.bf16.msra.mxu0 0
        %1302 = vmatprep.subr.bf16.mxu0 0
        %1303 = vmatpush2.bf16.msra.mxu0 0
        %1304 = vmatprep.subr.bf16.mxu0 0
        %1305 = vmatpush2.bf16.msra.mxu0 0
        %1306 = vmatprep.subr.bf16.mxu0 0
        %1307 = vmatpush2.bf16.msra.mxu0 0
        %1308 = vmatprep.mubr.bf16.mxu0 0
        %1309 = vmatmul.mubr.bf16.gmra.mxu0 %v850
        %v1310 = vpop.f32.mrf.mxu0
        %v1311 = vadd.f32 %v919, %v1310
        %v1312 = vpop.f32.mrf.mxu0
        %v1313 = vadd.f32 %v923, %v1312
        %v1314 = vpop.f32.mrf.mxu0
        %v1315 = vpop.f32.mrf.mxu0
        %1316 = vdwg.mxu0
        %1317 = vmatprep.subr.bf16.mxu0 %v1207
        %1318 = vmatpush1.bf16.msra.mxu0 %v1206
        %1319 = vmatprep.subr.bf16.mxu0 %v1199
        %1320 = vmatpush1.bf16.msra.mxu0 %v1198
        %1321 = vmatprep.subr.bf16.mxu0 %v1191
        %1322 = vmatpush1.bf16.msra.mxu0 %v1190
        %1323 = vmatprep.subr.bf16.mxu0 %v1183
        %1324 = vmatpush1.bf16.msra.mxu0 %v1182
        %1325 = vmatprep.subr.bf16.mxu0 %v1175
        %1326 = vmatpush1.bf16.msra.mxu0 %v1174
        %1327 = vmatprep.subr.bf16.mxu0 %v1167
        %1328 = vmatpush1.bf16.msra.mxu0 %v1166
        %1329 = vmatprep.subr.bf16.mxu0 %v1159
        %1330 = vmatpush1.bf16.msra.mxu0 %v1158
        %1331 = vmatprep.subr.bf16.mxu0 %v1151
        %1332 = vmatpush1.bf16.msra.mxu0 %v1150
        %1333 = vmatprep.subr.bf16.mxu0 0
        %1334 = vmatpush2.bf16.msra.mxu0 0
        %1335 = vmatprep.subr.bf16.mxu0 0
        %1336 = vmatpush2.bf16.msra.mxu0 0
        %1337 = vmatprep.subr.bf16.mxu0 0
        %1338 = vmatpush2.bf16.msra.mxu0 0
        %1339 = vmatprep.subr.bf16.mxu0 0
        %1340 = vmatpush2.bf16.msra.mxu0 0
        %1341 = vmatprep.subr.bf16.mxu0 0
        %1342 = vmatpush2.bf16.msra.mxu0 0
        %1343 = vmatprep.subr.bf16.mxu0 0
        %1344 = vmatpush2.bf16.msra.mxu0 0
        %1345 = vmatprep.subr.bf16.mxu0 0
        %1346 = vmatpush2.bf16.msra.mxu0 0
        %1347 = vmatprep.subr.bf16.mxu0 0
        %1348 = vmatpush2.bf16.msra.mxu0 0
        %1349 = vmatprep.mubr.bf16.mxu0 0
        %1350 = vmatmul.mubr.bf16.gmra.mxu0 %v850
        %v1351 = vpop.f32.mrf.mxu0
        %v1352 = vadd.f32 %v927, %v1351
        %v1353 = vpop.f32.mrf.mxu0
        %v1354 = vadd.f32 %v931, %v1353
        %v1355 = vpop.f32.mrf.mxu0
        %v1356 = vpop.f32.mrf.mxu0
        %1357 = vdwg.mxu0
        %1358 = vmatprep.subr.bf16.mxu0 %v1209
        %1359 = vmatpush1.bf16.msra.mxu0 %v1208
        %1360 = vmatprep.subr.bf16.mxu0 %v1201
        %1361 = vmatpush1.bf16.msra.mxu0 %v1200
        %1362 = vmatprep.subr.bf16.mxu0 %v1193
        %1363 = vmatpush1.bf16.msra.mxu0 %v1192
        %1364 = vmatprep.subr.bf16.mxu0 %v1185
        %1365 = vmatpush1.bf16.msra.mxu0 %v1184
        %1366 = vmatprep.subr.bf16.mxu0 %v1177
        %1367 = vmatpush1.bf16.msra.mxu0 %v1176
        %1368 = vmatprep.subr.bf16.mxu0 %v1169
        %1369 = vmatpush1.bf16.msra.mxu0 %v1168
        %1370 = vmatprep.subr.bf16.mxu0 %v1161
        %1371 = vmatpush1.bf16.msra.mxu0 %v1160
        %1372 = vmatprep.subr.bf16.mxu0 %v1153
        %1373 = vmatpush1.bf16.msra.mxu0 %v1152
        %1374 = vmatprep.subr.bf16.mxu0 0
        %1375 = vmatpush2.bf16.msra.mxu0 0
        %1376 = vmatprep.subr.bf16.mxu0 0
        %1377 = vmatpush2.bf16.msra.mxu0 0
        %1378 = vmatprep.subr.bf16.mxu0 0
        %1379 = vmatpush2.bf16.msra.mxu0 0
        %1380 = vmatprep.subr.bf16.mxu0 0
        %1381 = vmatpush2.bf16.msra.mxu0 0
        %1382 = vmatprep.subr.bf16.mxu0 0
        %1383 = vmatpush2.bf16.msra.mxu0 0
        %1384 = vmatprep.subr.bf16.mxu0 0
        %1385 = vmatpush2.bf16.msra.mxu0 0
        %1386 = vmatprep.subr.bf16.mxu0 0
        %1387 = vmatpush2.bf16.msra.mxu0 0
        %1388 = vmatprep.subr.bf16.mxu0 0
        %1389 = vmatpush2.bf16.msra.mxu0 0
        %1390 = vmatprep.mubr.bf16.mxu0 0
        %1391 = vmatmul.mubr.bf16.gmra.mxu0 %v850
        %v1392 = vpop.f32.mrf.mxu0
        %v1393 = vadd.f32 %v935, %v1392
        %v1394 = vpop.f32.mrf.mxu0
        %v1395 = vadd.f32 %v939, %v1394
        %v1396 = vpop.f32.mrf.mxu0
        %v1397 = vpop.f32.mrf.mxu0
        %1398 = vdwg.mxu0
        %1399 = vmatprep.subr.bf16.mxu0 %v1211
        %1400 = vmatpush1.bf16.msra.mxu0 %v1210
        %1401 = vmatprep.subr.bf16.mxu0 %v1203
        %1402 = vmatpush1.bf16.msra.mxu0 %v1202
        %1403 = vmatprep.subr.bf16.mxu0 %v1195
        %1404 = vmatpush1.bf16.msra.mxu0 %v1194
        %1405 = vmatprep.subr.bf16.mxu0 %v1187
        %1406 = vmatpush1.bf16.msra.mxu0 %v1186
        %1407 = vmatprep.subr.bf16.mxu0 %v1179
        %1408 = vmatpush1.bf16.msra.mxu0 %v1178
        %1409 = vmatprep.subr.bf16.mxu0 %v1171
        %1410 = vmatpush1.bf16.msra.mxu0 %v1170
        %1411 = vmatprep.subr.bf16.mxu0 %v1163
        %1412 = vmatpush1.bf16.msra.mxu0 %v1162
        %1413 = vmatprep.subr.bf16.mxu0 %v1155
        %1414 = vmatpush1.bf16.msra.mxu0 %v1154
        %1415 = vmatprep.subr.bf16.mxu0 0
        %1416 = vmatpush2.bf16.msra.mxu0 0
        %1417 = vmatprep.subr.bf16.mxu0 0
        %1418 = vmatpush2.bf16.msra.mxu0 0
        %1419 = vmatprep.subr.bf16.mxu0 0
        %1420 = vmatpush2.bf16.msra.mxu0 0
        %1421 = vmatprep.subr.bf16.mxu0 0
        %1422 = vmatpush2.bf16.msra.mxu0 0
        %1423 = vmatprep.subr.bf16.mxu0 0
        %1424 = vmatpush2.bf16.msra.mxu0 0
        %1425 = vmatprep.subr.bf16.mxu0 0
        %1426 = vmatpush2.bf16.msra.mxu0 0
        %1427 = vmatprep.subr.bf16.mxu0 0
        %1428 = vmatpush2.bf16.msra.mxu0 0
        %1429 = vmatprep.subr.bf16.mxu0 0
        %1430 = vmatpush2.bf16.msra.mxu0 0
        %1431 = vmatprep.mubr.bf16.mxu0 0
        %1432 = vmatmul.mubr.bf16.gmra.mxu0 %v850
        %v1433 = vpop.f32.mrf.mxu0
        %v1434 = vadd.f32 %v943, %v1433
        %v1435 = vpop.f32.mrf.mxu0
        %v1436 = vadd.f32 %v947, %v1435
        %v1437 = vpop.f32.mrf.mxu0
        %v1438 = vpop.f32.mrf.mxu0
        %1439 = vdwg.mxu0
        %v1440 = vmax.f32 %v1311, 0.0
        %v1441 = vmax.f32 %v1313, 0.0
        %v1442 = vmax.f32 %v1352, 0.0
        %v1443 = vmax.f32 %v1354, 0.0
        %v1444 = vmax.f32 %v1393, 0.0
        %v1445 = vmax.f32 %v1395, 0.0
        %v1446 = vmax.f32 %v1434, 0.0
        %v1447 = vmax.f32 %v1436, 0.0
        %v1448 = vpack.c.bf16 %v1440, %v1440
        %v1449 = vpack.c.bf16 %v1441, %v1441
        %v1450 = vpack.c.bf16 %v1442, %v1442
        %v1451 = vpack.c.bf16 %v1443, %v1443
        %v1452 = vpack.c.bf16 %v1444, %v1444
        %v1453 = vpack.c.bf16 %v1445, %v1445
        %v1454 = vpack.c.bf16 %v1446, %v1446
        %v1455 = vpack.c.bf16 %v1447, %v1447
        %v1456 = vld [vmem:[%s485] sm:$0xf]
        %v1457 = vld [vmem:[%s485 + $0x4] sm:$0xf]
        %v1458 = vld [vmem:[%s485 + $0x8] sm:$0xf]
        %v1459 = vld [vmem:[%s485 + $0xc] sm:$0xf]
        %v1460 = vld [vmem:[%s485 + $0x10] sm:$0xf]
        %v1461 = vld [vmem:[%s485 + $0x14] sm:$0xf]
        %v1462 = vld [vmem:[%s485 + $0x18] sm:$0xf]
        %v1463 = vld [vmem:[%s485 + $0x1c] sm:$0xf]
        %v1464 = vld [vmem:[%s485 + $0x20] sm:$0xf]
        %v1465 = vld [vmem:[%s485 + $0x24] sm:$0xf]
        %v1466 = vld [vmem:[%s485 + $0x28] sm:$0xf]
        %v1467 = vld [vmem:[%s485 + $0x2c] sm:$0xf]
        %v1468 = vld [vmem:[%s485 + $0x30] sm:$0xf]
        %v1469 = vld [vmem:[%s485 + $0x34] sm:$0xf]
        %v1470 = vld [vmem:[%s485 + $0x38] sm:$0xf]
        %v1471 = vld [vmem:[%s485 + $0x3c] sm:$0xf]
        %v1472 = vld [vmem:[%s485 + $0x40] sm:$0xf]
        %v1473 = vld [vmem:[%s485 + $0x44] sm:$0xf]
        %v1474 = vld [vmem:[%s485 + $0x48] sm:$0xf]
        %v1475 = vld [vmem:[%s485 + $0x4c] sm:$0xf]
        %v1476 = vld [vmem:[%s485 + $0x50] sm:$0xf]
        %v1477 = vld [vmem:[%s485 + $0x54] sm:$0xf]
        %v1478 = vld [vmem:[%s485 + $0x58] sm:$0xf]
        %v1479 = vld [vmem:[%s485 + $0x5c] sm:$0xf]
        %v1480 = vld [vmem:[%s485 + $0x60] sm:$0xf]
        %v1481 = vld [vmem:[%s485 + $0x64] sm:$0xf]
        %v1482 = vld [vmem:[%s485 + $0x68] sm:$0xf]
        %v1483 = vld [vmem:[%s485 + $0x6c] sm:$0xf]
        %v1484 = vld [vmem:[%s485 + $0x70] sm:$0xf]
        %v1485 = vld [vmem:[%s485 + $0x74] sm:$0xf]
        %v1486 = vld [vmem:[%s485 + $0x78] sm:$0xf]
        %v1487 = vld [vmem:[%s485 + $0x7c] sm:$0xf]
        %v1488 = vld [vmem:[%s485 + $0x80] sm:$0xf]
        %v1489 = vld [vmem:[%s485 + $0x84] sm:$0xf]
        %v1490 = vld [vmem:[%s485 + $0x88] sm:$0xf]
        %v1491 = vld [vmem:[%s485 + $0x8c] sm:$0xf]
        %v1492 = vld [vmem:[%s485 + $0x90] sm:$0xf]
        %v1493 = vld [vmem:[%s485 + $0x94] sm:$0xf]
        %v1494 = vld [vmem:[%s485 + $0x98] sm:$0xf]
        %v1495 = vld [vmem:[%s485 + $0x9c] sm:$0xf]
        %v1496 = vld [vmem:[%s485 + $0xa0] sm:$0xf]
        %v1497 = vld [vmem:[%s485 + $0xa4] sm:$0xf]
        %v1498 = vld [vmem:[%s485 + $0xa8] sm:$0xf]
        %v1499 = vld [vmem:[%s485 + $0xac] sm:$0xf]
        %v1500 = vld [vmem:[%s485 + $0xb0] sm:$0xf]
        %v1501 = vld [vmem:[%s485 + $0xb4] sm:$0xf]
        %v1502 = vld [vmem:[%s485 + $0xb8] sm:$0xf]
        %v1503 = vld [vmem:[%s485 + $0xbc] sm:$0xf]
        %v1504 = vld [vmem:[%s485 + $0xc0] sm:$0xf]
        %v1505 = vld [vmem:[%s485 + $0xc4] sm:$0xf]
        %v1506 = vld [vmem:[%s485 + $0xc8] sm:$0xf]
        %v1507 = vld [vmem:[%s485 + $0xcc] sm:$0xf]
        %v1508 = vld [vmem:[%s485 + $0xd0] sm:$0xf]
        %v1509 = vld [vmem:[%s485 + $0xd4] sm:$0xf]
        %v1510 = vld [vmem:[%s485 + $0xd8] sm:$0xf]
        %v1511 = vld [vmem:[%s485 + $0xdc] sm:$0xf]
        %v1512 = vld [vmem:[%s485 + $0xe0] sm:$0xf]
        %v1513 = vld [vmem:[%s485 + $0xe4] sm:$0xf]
        %v1514 = vld [vmem:[%s485 + $0xe8] sm:$0xf]
        %v1515 = vld [vmem:[%s485 + $0xec] sm:$0xf]
        %v1516 = vld [vmem:[%s485 + $0xf0] sm:$0xf]
        %v1517 = vld [vmem:[%s485 + $0xf4] sm:$0xf]
        %v1518 = vld [vmem:[%s485 + $0xf8] sm:$0xf]
        %v1519 = vld [vmem:[%s485 + $0xfc] sm:$0xf]
        %v1520 = vld [vmem:[%s485 + $0x100] sm:$0xf]
        %v1521 = vld [vmem:[%s485 + $0x104] sm:$0xf]
        %v1522 = vld [vmem:[%s485 + $0x108] sm:$0xf]
        %v1523 = vld [vmem:[%s485 + $0x10c] sm:$0xf]
        %v1524 = vld [vmem:[%s485 + $0x110] sm:$0xf]
        %v1525 = vld [vmem:[%s485 + $0x114] sm:$0xf]
        %v1526 = vld [vmem:[%s485 + $0x118] sm:$0xf]
        %v1527 = vld [vmem:[%s485 + $0x11c] sm:$0xf]
        %v1528 = vld [vmem:[%s485 + $0x120] sm:$0xf]
        %v1529 = vld [vmem:[%s485 + $0x124] sm:$0xf]
        %v1530 = vld [vmem:[%s485 + $0x128] sm:$0xf]
        %v1531 = vld [vmem:[%s485 + $0x12c] sm:$0xf]
        %v1532 = vld [vmem:[%s485 + $0x130] sm:$0xf]
        %v1533 = vld [vmem:[%s485 + $0x134] sm:$0xf]
        %v1534 = vld [vmem:[%s485 + $0x138] sm:$0xf]
        %v1535 = vld [vmem:[%s485 + $0x13c] sm:$0xf]
        %v1536 = vld [vmem:[%s485 + $0x140] sm:$0xf]
        %v1537 = vld [vmem:[%s485 + $0x144] sm:$0xf]
        %v1538 = vld [vmem:[%s485 + $0x148] sm:$0xf]
        %v1539 = vld [vmem:[%s485 + $0x14c] sm:$0xf]
        %v1540 = vld [vmem:[%s485 + $0x150] sm:$0xf]
        %v1541 = vld [vmem:[%s485 + $0x154] sm:$0xf]
        %v1542 = vld [vmem:[%s485 + $0x158] sm:$0xf]
        %v1543 = vld [vmem:[%s485 + $0x15c] sm:$0xf]
        %v1544 = vld [vmem:[%s485 + $0x160] sm:$0xf]
        %v1545 = vld [vmem:[%s485 + $0x164] sm:$0xf]
        %v1546 = vld [vmem:[%s485 + $0x168] sm:$0xf]
        %v1547 = vld [vmem:[%s485 + $0x16c] sm:$0xf]
        %v1548 = vld [vmem:[%s485 + $0x170] sm:$0xf]
        %v1549 = vld [vmem:[%s485 + $0x174] sm:$0xf]
        %v1550 = vld [vmem:[%s485 + $0x178] sm:$0xf]
        %v1551 = vld [vmem:[%s485 + $0x17c] sm:$0xf]
        %v1552 = vld [vmem:[%s485 + $0x180] sm:$0xf]
        %v1553 = vld [vmem:[%s485 + $0x184] sm:$0xf]
        %v1554 = vld [vmem:[%s485 + $0x188] sm:$0xf]
        %v1555 = vld [vmem:[%s485 + $0x18c] sm:$0xf]
        %v1556 = vld [vmem:[%s485 + $0x190] sm:$0xf]
        %v1557 = vld [vmem:[%s485 + $0x194] sm:$0xf]
        %v1558 = vld [vmem:[%s485 + $0x198] sm:$0xf]
        %v1559 = vld [vmem:[%s485 + $0x19c] sm:$0xf]
        %v1560 = vld [vmem:[%s485 + $0x1a0] sm:$0xf]
        %v1561 = vld [vmem:[%s485 + $0x1a4] sm:$0xf]
        %v1562 = vld [vmem:[%s485 + $0x1a8] sm:$0xf]
        %v1563 = vld [vmem:[%s485 + $0x1ac] sm:$0xf]
        %v1564 = vld [vmem:[%s485 + $0x1b0] sm:$0xf]
        %v1565 = vld [vmem:[%s485 + $0x1b4] sm:$0xf]
        %v1566 = vld [vmem:[%s485 + $0x1b8] sm:$0xf]
        %v1567 = vld [vmem:[%s485 + $0x1bc] sm:$0xf]
        %v1568 = vld [vmem:[%s485 + $0x1c0] sm:$0xf]
        %v1569 = vld [vmem:[%s485 + $0x1c4] sm:$0xf]
        %v1570 = vld [vmem:[%s485 + $0x1c8] sm:$0xf]
        %v1571 = vld [vmem:[%s485 + $0x1cc] sm:$0xf]
        %v1572 = vld [vmem:[%s485 + $0x1d0] sm:$0xf]
        %v1573 = vld [vmem:[%s485 + $0x1d4] sm:$0xf]
        %v1574 = vld [vmem:[%s485 + $0x1d8] sm:$0xf]
        %v1575 = vld [vmem:[%s485 + $0x1dc] sm:$0xf]
        %v1576 = vld [vmem:[%s485 + $0x1e0] sm:$0xf]
        %v1577 = vld [vmem:[%s485 + $0x1e4] sm:$0xf]
        %v1578 = vld [vmem:[%s485 + $0x1e8] sm:$0xf]
        %v1579 = vld [vmem:[%s485 + $0x1ec] sm:$0xf]
        %v1580 = vld [vmem:[%s485 + $0x1f0] sm:$0xf]
        %v1581 = vld [vmem:[%s485 + $0x1f4] sm:$0xf]
        %v1582 = vld [vmem:[%s485 + $0x1f8] sm:$0xf]
        %v1583 = vld [vmem:[%s485 + $0x1fc] sm:$0xf]
        %v1584 = vlaneseq
        %v1585 = vshrl.u32 %v1584, 7
        %v1586 = vsub.s32 2, %v1585
        %v1587 = vrot.slane %v581, %v1586
        %v1716 = vunpack.c.l.b16 %v1456
        %v1717 = vunpack.c.l.b16 %v1457
        %v1718 = vunpack.c.l.b16 %v1458
        %v1719 = vunpack.c.l.b16 %v1459
        %v1720 = vunpack.c.l.b16 %v1460
        %v1721 = vunpack.c.l.b16 %v1461
        %v1722 = vunpack.c.l.b16 %v1462
        %v1723 = vunpack.c.l.b16 %v1463
        %v1724 = vunpack.c.l.b16 %v1464
        %v1725 = vunpack.c.l.b16 %v1465
        %v1726 = vunpack.c.l.b16 %v1466
        %v1727 = vunpack.c.l.b16 %v1467
        %v1728 = vunpack.c.l.b16 %v1468
        %v1729 = vunpack.c.l.b16 %v1469
        %v1730 = vunpack.c.l.b16 %v1470
        %v1731 = vunpack.c.l.b16 %v1471
        %v1732 = vunpack.c.l.b16 %v1472
        %v1733 = vunpack.c.l.b16 %v1473
        %v1734 = vunpack.c.l.b16 %v1474
        %v1735 = vunpack.c.l.b16 %v1475
        %v1736 = vunpack.c.l.b16 %v1476
        %v1737 = vunpack.c.l.b16 %v1477
        %v1738 = vunpack.c.l.b16 %v1478
        %v1739 = vunpack.c.l.b16 %v1479
        %v1740 = vunpack.c.l.b16 %v1480
        %v1741 = vunpack.c.l.b16 %v1481
        %v1742 = vunpack.c.l.b16 %v1482
        %v1743 = vunpack.c.l.b16 %v1483
        %v1744 = vunpack.c.l.b16 %v1484
        %v1745 = vunpack.c.l.b16 %v1485
        %v1746 = vunpack.c.l.b16 %v1486
        %v1747 = vunpack.c.l.b16 %v1487
        %v1748 = vunpack.c.l.b16 %v1488
        %v1749 = vunpack.c.l.b16 %v1489
        %v1750 = vunpack.c.l.b16 %v1490
        %v1751 = vunpack.c.l.b16 %v1491
        %v1752 = vunpack.c.l.b16 %v1492
        %v1753 = vunpack.c.l.b16 %v1493
        %v1754 = vunpack.c.l.b16 %v1494
        %v1755 = vunpack.c.l.b16 %v1495
        %v1756 = vunpack.c.l.b16 %v1496
        %v1757 = vunpack.c.l.b16 %v1497
        %v1758 = vunpack.c.l.b16 %v1498
        %v1759 = vunpack.c.l.b16 %v1499
        %v1760 = vunpack.c.l.b16 %v1500
        %v1761 = vunpack.c.l.b16 %v1501
        %v1762 = vunpack.c.l.b16 %v1502
        %v1763 = vunpack.c.l.b16 %v1503
        %v1764 = vunpack.c.l.b16 %v1504
        %v1765 = vunpack.c.l.b16 %v1505
        %v1766 = vunpack.c.l.b16 %v1506
        %v1767 = vunpack.c.l.b16 %v1507
        %v1768 = vunpack.c.l.b16 %v1508
        %v1769 = vunpack.c.l.b16 %v1509
        %v1770 = vunpack.c.l.b16 %v1510
        %v1771 = vunpack.c.l.b16 %v1511
        %v1772 = vunpack.c.l.b16 %v1512
        %v1773 = vunpack.c.l.b16 %v1513
        %v1774 = vunpack.c.l.b16 %v1514
        %v1775 = vunpack.c.l.b16 %v1515
        %v1776 = vunpack.c.l.b16 %v1516
        %v1777 = vunpack.c.l.b16 %v1517
        %v1778 = vunpack.c.l.b16 %v1518
        %v1779 = vunpack.c.l.b16 %v1519
        %v1780 = vunpack.c.l.b16 %v1520
        %v1781 = vunpack.c.l.b16 %v1521
        %v1782 = vunpack.c.l.b16 %v1522
        %v1783 = vunpack.c.l.b16 %v1523
        %v1784 = vunpack.c.l.b16 %v1524
        %v1785 = vunpack.c.l.b16 %v1525
        %v1786 = vunpack.c.l.b16 %v1526
        %v1787 = vunpack.c.l.b16 %v1527
        %v1788 = vunpack.c.l.b16 %v1528
        %v1789 = vunpack.c.l.b16 %v1529
        %v1790 = vunpack.c.l.b16 %v1530
        %v1791 = vunpack.c.l.b16 %v1531
        %v1792 = vunpack.c.l.b16 %v1532
        %v1793 = vunpack.c.l.b16 %v1533
        %v1794 = vunpack.c.l.b16 %v1534
        %v1795 = vunpack.c.l.b16 %v1535
        %v1796 = vunpack.c.l.b16 %v1536
        %v1797 = vunpack.c.l.b16 %v1537
        %v1798 = vunpack.c.l.b16 %v1538
        %v1799 = vunpack.c.l.b16 %v1539
        %v1800 = vunpack.c.l.b16 %v1540
        %v1801 = vunpack.c.l.b16 %v1541
        %v1802 = vunpack.c.l.b16 %v1542
        %v1803 = vunpack.c.l.b16 %v1543
        %v1804 = vunpack.c.l.b16 %v1544
        %v1805 = vunpack.c.l.b16 %v1545
        %v1806 = vunpack.c.l.b16 %v1546
        %v1807 = vunpack.c.l.b16 %v1547
        %v1808 = vunpack.c.l.b16 %v1548
        %v1809 = vunpack.c.l.b16 %v1549
        %v1810 = vunpack.c.l.b16 %v1550
        %v1811 = vunpack.c.l.b16 %v1551
        %v1812 = vunpack.c.l.b16 %v1552
        %v1813 = vunpack.c.l.b16 %v1553
        %v1814 = vunpack.c.l.b16 %v1554
        %v1815 = vunpack.c.l.b16 %v1555
        %v1816 = vunpack.c.l.b16 %v1556
        %v1817 = vunpack.c.l.b16 %v1557
        %v1818 = vunpack.c.l.b16 %v1558
        %v1819 = vunpack.c.l.b16 %v1559
        %v1820 = vunpack.c.l.b16 %v1560
        %v1821 = vunpack.c.l.b16 %v1561
        %v1822 = vunpack.c.l.b16 %v1562
        %v1823 = vunpack.c.l.b16 %v1563
        %v1824 = vunpack.c.l.b16 %v1564
        %v1825 = vunpack.c.l.b16 %v1565
        %v1826 = vunpack.c.l.b16 %v1566
        %v1827 = vunpack.c.l.b16 %v1567
        %v1828 = vunpack.c.l.b16 %v1568
        %v1829 = vunpack.c.l.b16 %v1569
        %v1830 = vunpack.c.l.b16 %v1570
        %v1831 = vunpack.c.l.b16 %v1571
        %v1832 = vunpack.c.l.b16 %v1572
        %v1833 = vunpack.c.l.b16 %v1573
        %v1834 = vunpack.c.l.b16 %v1574
        %v1835 = vunpack.c.l.b16 %v1575
        %v1836 = vunpack.c.l.b16 %v1576
        %v1837 = vunpack.c.l.b16 %v1577
        %v1838 = vunpack.c.l.b16 %v1578
        %v1839 = vunpack.c.l.b16 %v1579
        %v1840 = vunpack.c.l.b16 %v1580
        %v1841 = vunpack.c.l.b16 %v1581
        %v1842 = vunpack.c.l.b16 %v1582
        %v1843 = vunpack.c.l.b16 %v1583
        %v1844 = vpack.c.b16 %v1717, %v1716
        %v1845 = vpack.c.b16 %v1719, %v1718
        %v1846 = vpack.c.b16 %v1721, %v1720
        %v1847 = vpack.c.b16 %v1723, %v1722
        %v1848 = vpack.c.b16 %v1725, %v1724
        %v1849 = vpack.c.b16 %v1727, %v1726
        %v1850 = vpack.c.b16 %v1729, %v1728
        %v1851 = vpack.c.b16 %v1731, %v1730
        %v1852 = vpack.c.b16 %v1733, %v1732
        %v1853 = vpack.c.b16 %v1735, %v1734
        %v1854 = vpack.c.b16 %v1737, %v1736
        %v1855 = vpack.c.b16 %v1739, %v1738
        %v1856 = vpack.c.b16 %v1741, %v1740
        %v1857 = vpack.c.b16 %v1743, %v1742
        %v1858 = vpack.c.b16 %v1745, %v1744
        %v1859 = vpack.c.b16 %v1747, %v1746
        %v1860 = vpack.c.b16 %v1749, %v1748
        %v1861 = vpack.c.b16 %v1751, %v1750
        %v1862 = vpack.c.b16 %v1753, %v1752
        %v1863 = vpack.c.b16 %v1755, %v1754
        %v1864 = vpack.c.b16 %v1757, %v1756
        %v1865 = vpack.c.b16 %v1759, %v1758
        %v1866 = vpack.c.b16 %v1761, %v1760
        %v1867 = vpack.c.b16 %v1763, %v1762
        %v1868 = vpack.c.b16 %v1765, %v1764
        %v1869 = vpack.c.b16 %v1767, %v1766
        %v1870 = vpack.c.b16 %v1769, %v1768
        %v1871 = vpack.c.b16 %v1771, %v1770
        %v1872 = vpack.c.b16 %v1773, %v1772
        %v1873 = vpack.c.b16 %v1775, %v1774
        %v1874 = vpack.c.b16 %v1777, %v1776
        %v1875 = vpack.c.b16 %v1779, %v1778
        %v1876 = vpack.c.b16 %v1781, %v1780
        %v1877 = vpack.c.b16 %v1783, %v1782
        %v1878 = vpack.c.b16 %v1785, %v1784
        %v1879 = vpack.c.b16 %v1787, %v1786
        %v1880 = vpack.c.b16 %v1789, %v1788
        %v1881 = vpack.c.b16 %v1791, %v1790
        %v1882 = vpack.c.b16 %v1793, %v1792
        %v1883 = vpack.c.b16 %v1795, %v1794
        %v1884 = vpack.c.b16 %v1797, %v1796
        %v1885 = vpack.c.b16 %v1799, %v1798
        %v1886 = vpack.c.b16 %v1801, %v1800
        %v1887 = vpack.c.b16 %v1803, %v1802
        %v1888 = vpack.c.b16 %v1805, %v1804
        %v1889 = vpack.c.b16 %v1807, %v1806
        %v1890 = vpack.c.b16 %v1809, %v1808
        %v1891 = vpack.c.b16 %v1811, %v1810
        %v1892 = vpack.c.b16 %v1813, %v1812
        %v1893 = vpack.c.b16 %v1815, %v1814
        %v1894 = vpack.c.b16 %v1817, %v1816
        %v1895 = vpack.c.b16 %v1819, %v1818
        %v1896 = vpack.c.b16 %v1821, %v1820
        %v1897 = vpack.c.b16 %v1823, %v1822
        %v1898 = vpack.c.b16 %v1825, %v1824
        %v1899 = vpack.c.b16 %v1827, %v1826
        %v1900 = vpack.c.b16 %v1829, %v1828
        %v1901 = vpack.c.b16 %v1831, %v1830
        %v1902 = vpack.c.b16 %v1833, %v1832
        %v1903 = vpack.c.b16 %v1835, %v1834
        %v1904 = vpack.c.b16 %v1837, %v1836
        %v1905 = vpack.c.b16 %v1839, %v1838
        %v1906 = vpack.c.b16 %v1841, %v1840
        %v1907 = vpack.c.b16 %v1843, %v1842
        %1972 = vmatprep.subr.bf16.mxu0 0
        %1973 = vmatpush1.bf16.msra.mxu0 %v1851
        %1974 = vmatprep.subr.bf16.mxu0 0
        %1975 = vmatpush1.bf16.msra.mxu0 %v1850
        %1976 = vmatprep.subr.bf16.mxu0 0
        %1977 = vmatpush1.bf16.msra.mxu0 %v1849
        %1978 = vmatprep.subr.bf16.mxu0 0
        %1979 = vmatpush1.bf16.msra.mxu0 %v1848
        %1980 = vmatprep.subr.bf16.mxu0 0
        %1981 = vmatpush1.bf16.msra.mxu0 %v1847
        %1982 = vmatprep.subr.bf16.mxu0 0
        %1983 = vmatpush1.bf16.msra.mxu0 %v1846
        %1984 = vmatprep.subr.bf16.mxu0 0
        %1985 = vmatpush1.bf16.msra.mxu0 %v1845
        %1986 = vmatprep.subr.bf16.mxu0 0
        %1987 = vmatpush1.bf16.msra.mxu0 %v1844
        %1988 = vmatprep.subr.bf16.mxu0 0
        %1989 = vmatpush2.bf16.msra.mxu0 %v1859
        %1990 = vmatprep.subr.bf16.mxu0 0
        %1991 = vmatpush2.bf16.msra.mxu0 %v1858
        %1992 = vmatprep.subr.bf16.mxu0 0
        %1993 = vmatpush2.bf16.msra.mxu0 %v1857
        %1994 = vmatprep.subr.bf16.mxu0 0
        %1995 = vmatpush2.bf16.msra.mxu0 %v1856
        %1996 = vmatprep.subr.bf16.mxu0 0
        %1997 = vmatpush2.bf16.msra.mxu0 %v1855
        %1998 = vmatprep.subr.bf16.mxu0 0
        %1999 = vmatpush2.bf16.msra.mxu0 %v1854
        %2000 = vmatprep.subr.bf16.mxu0 0
        %2001 = vmatpush2.bf16.msra.mxu0 %v1853
        %2002 = vmatprep.subr.bf16.mxu0 0
        %2003 = vmatpush2.bf16.msra.mxu0 %v1852
        %2004 = vmatprep.mubr.bf16.mxu0 %v1449
        %2005 = vmatmul.mubr.bf16.gmra.mxu0 %v1448
        %v2006 = vpop.f32.mrf.mxu0
        %v2007 = vadd.f32 %v1587, %v2006
        %v2008 = vpop.f32.mrf.mxu0
        %v2009 = vpop.f32.mrf.mxu0
        %v2010 = vpop.f32.mrf.mxu0
        %2011 = vdwg.mxu0
        %2012 = vmatprep.subr.bf16.mxu0 0
        %2013 = vmatpush1.bf16.msra.mxu0 %v1867
        %2014 = vmatprep.subr.bf16.mxu0 0
        %2015 = vmatpush1.bf16.msra.mxu0 %v1866
        %2016 = vmatprep.subr.bf16.mxu0 0
        %2017 = vmatpush1.bf16.msra.mxu0 %v1865
        %2018 = vmatprep.subr.bf16.mxu0 0
        %2019 = vmatpush1.bf16.msra.mxu0 %v1864
        %2020 = vmatprep.subr.bf16.mxu0 0
        %2021 = vmatpush1.bf16.msra.mxu0 %v1863
        %2022 = vmatprep.subr.bf16.mxu0 0
        %2023 = vmatpush1.bf16.msra.mxu0 %v1862
        %2024 = vmatprep.subr.bf16.mxu0 0
        %2025 = vmatpush1.bf16.msra.mxu0 %v1861
        %2026 = vmatprep.subr.bf16.mxu0 0
        %2027 = vmatpush1.bf16.msra.mxu0 %v1860
        %2028 = vmatprep.subr.bf16.mxu0 0
        %2029 = vmatpush2.bf16.msra.mxu0 %v1875
        %2030 = vmatprep.subr.bf16.mxu0 0
        %2031 = vmatpush2.bf16.msra.mxu0 %v1874
        %2032 = vmatprep.subr.bf16.mxu0 0
        %2033 = vmatpush2.bf16.msra.mxu0 %v1873
        %2034 = vmatprep.subr.bf16.mxu0 0
        %2035 = vmatpush2.bf16.msra.mxu0 %v1872
        %2036 = vmatprep.subr.bf16.mxu0 0
        %2037 = vmatpush2.bf16.msra.mxu0 %v1871
        %2038 = vmatprep.subr.bf16.mxu0 0
        %2039 = vmatpush2.bf16.msra.mxu0 %v1870
        %2040 = vmatprep.subr.bf16.mxu0 0
        %2041 = vmatpush2.bf16.msra.mxu0 %v1869
        %2042 = vmatprep.subr.bf16.mxu0 0
        %2043 = vmatpush2.bf16.msra.mxu0 %v1868
        %2044 = vmatprep.mubr.bf16.mxu0 %v1451
        %2045 = vmatmul.mubr.bf16.gmra.mxu0 %v1450
        %v2046 = vpop.f32.mrf.mxu0
        %v2047 = vadd.f32 %v2007, %v2046
        %v2048 = vpop.f32.mrf.mxu0
        %v2049 = vpop.f32.mrf.mxu0
        %v2050 = vpop.f32.mrf.mxu0
        %2051 = vdwg.mxu0
        %2052 = vmatprep.subr.bf16.mxu0 0
        %2053 = vmatpush1.bf16.msra.mxu0 %v1883
        %2054 = vmatprep.subr.bf16.mxu0 0
        %2055 = vmatpush1.bf16.msra.mxu0 %v1882
        %2056 = vmatprep.subr.bf16.mxu0 0
        %2057 = vmatpush1.bf16.msra.mxu0 %v1881
        %2058 = vmatprep.subr.bf16.mxu0 0
        %2059 = vmatpush1.bf16.msra.mxu0 %v1880
        %2060 = vmatprep.subr.bf16.mxu0 0
        %2061 = vmatpush1.bf16.msra.mxu0 %v1879
        %2062 = vmatprep.subr.bf16.mxu0 0
        %2063 = vmatpush1.bf16.msra.mxu0 %v1878
        %2064 = vmatprep.subr.bf16.mxu0 0
        %2065 = vmatpush1.bf16.msra.mxu0 %v1877
        %2066 = vmatprep.subr.bf16.mxu0 0
        %2067 = vmatpush1.bf16.msra.mxu0 %v1876
        %2068 = vmatprep.subr.bf16.mxu0 0
        %2069 = vmatpush2.bf16.msra.mxu0 %v1891
        %2070 = vmatprep.subr.bf16.mxu0 0
        %2071 = vmatpush2.bf16.msra.mxu0 %v1890
        %2072 = vmatprep.subr.bf16.mxu0 0
        %2073 = vmatpush2.bf16.msra.mxu0 %v1889
        %2074 = vmatprep.subr.bf16.mxu0 0
        %2075 = vmatpush2.bf16.msra.mxu0 %v1888
        %2076 = vmatprep.subr.bf16.mxu0 0
        %2077 = vmatpush2.bf16.msra.mxu0 %v1887
        %2078 = vmatprep.subr.bf16.mxu0 0
        %2079 = vmatpush2.bf16.msra.mxu0 %v1886
        %2080 = vmatprep.subr.bf16.mxu0 0
        %2081 = vmatpush2.bf16.msra.mxu0 %v1885
        %2082 = vmatprep.subr.bf16.mxu0 0
        %2083 = vmatpush2.bf16.msra.mxu0 %v1884
        %2084 = vmatprep.mubr.bf16.mxu0 %v1453
        %2085 = vmatmul.mubr.bf16.gmra.mxu0 %v1452
        %v2086 = vpop.f32.mrf.mxu0
        %v2087 = vadd.f32 %v2047, %v2086
        %v2088 = vpop.f32.mrf.mxu0
        %v2089 = vpop.f32.mrf.mxu0
        %v2090 = vpop.f32.mrf.mxu0
        %2091 = vdwg.mxu0
        %2092 = vmatprep.subr.bf16.mxu0 0
        %2093 = vmatpush1.bf16.msra.mxu0 %v1899
        %2094 = vmatprep.subr.bf16.mxu0 0
        %2095 = vmatpush1.bf16.msra.mxu0 %v1898
        %2096 = vmatprep.subr.bf16.mxu0 0
        %2097 = vmatpush1.bf16.msra.mxu0 %v1897
        %2098 = vmatprep.subr.bf16.mxu0 0
        %2099 = vmatpush1.bf16.msra.mxu0 %v1896
        %2100 = vmatprep.subr.bf16.mxu0 0
        %2101 = vmatpush1.bf16.msra.mxu0 %v1895
        %2102 = vmatprep.subr.bf16.mxu0 0
        %2103 = vmatpush1.bf16.msra.mxu0 %v1894
        %2104 = vmatprep.subr.bf16.mxu0 0
        %2105 = vmatpush1.bf16.msra.mxu0 %v1893
        %2106 = vmatprep.subr.bf16.mxu0 0
        %2107 = vmatpush1.bf16.msra.mxu0 %v1892
        %2108 = vmatprep.subr.bf16.mxu0 0
        %2109 = vmatpush2.bf16.msra.mxu0 %v1907
        %2110 = vmatprep.subr.bf16.mxu0 0
        %2111 = vmatpush2.bf16.msra.mxu0 %v1906
        %2112 = vmatprep.subr.bf16.mxu0 0
        %2113 = vmatpush2.bf16.msra.mxu0 %v1905
        %2114 = vmatprep.subr.bf16.mxu0 0
        %2115 = vmatpush2.bf16.msra.mxu0 %v1904
        %2116 = vmatprep.subr.bf16.mxu0 0
        %2117 = vmatpush2.bf16.msra.mxu0 %v1903
        %2118 = vmatprep.subr.bf16.mxu0 0
        %2119 = vmatpush2.bf16.msra.mxu0 %v1902
        %2120 = vmatprep.subr.bf16.mxu0 0
        %2121 = vmatpush2.bf16.msra.mxu0 %v1901
        %2122 = vmatprep.subr.bf16.mxu0 0
        %2123 = vmatpush2.bf16.msra.mxu0 %v1900
        %2124 = vmatprep.mubr.bf16.mxu0 %v1455
        %2125 = vmatmul.mubr.bf16.gmra.mxu0 %v1454
        %v2126 = vpop.f32.mrf.mxu0
        %v2127 = vadd.f32 %v2087, %v2126
        %v2128 = vpop.f32.mrf.mxu0
        %v2129 = vpop.f32.mrf.mxu0
        %v2130 = vpop.f32.mrf.mxu0
        %2131 = vdwg.mxu0
        %v2132 = vadd.f32 %v849, %v2127
        %2133 = vadd.xlane.f32.xlu0 %v2132
        %v2134 = vpop.xlane.xlu0 %2133
        %v2135 = vmul.f32 %v2132, %v2132
        %2136 = vadd.xlane.f32.xlu0 %v2135
        %v2137 = vpop.xlane.xlu0 %2136
        %v2138 = vmul.f32 %v2134, 0.0078125
        %v2139 = vmul.f32 %v2137, 0.0078125
        %v2140 = vmul.f32 %v2138, %v2138
        %v2141 = vsub.f32 %v2139, %v2140
        %v2142 = vsub.f32 %v2132, %v2138
        %v2143 = vadd.f32 %v2141, 1e-06
        %v2144 = vrsqrt.pop %v2143
        %v2145 = vmul.f32 %v2142, %v2144
        %v2146 = vlaneseq
        %v2147 = vshrl.u32 %v2146, 7
        %v2148 = vsub.s32 7, %v2147
        %v2149 = vrot.slane %v581, %v2148
        %v2150 = vmul.f32 %v2145, %v2149
        %v2151 = vlaneseq
        %v2152 = vshrl.u32 %v2151, 7
        %v2153 = vsub.s32 0, %v2152
        %v2154 = vrot.slane %v582, %v2153
        %v2155 = vadd.f32 %v2150, %v2154
        %s2156 = scvt.s32.f32 %s574
        %v2157 = vstv %s2156
        %v2158 = vmul.f32 %v580, %v2157
        %v2159 = vadd.f32 %v2155, %v2158
        %s2160 = smul.u32 %s572, 8
        %s2161 = scalar_lea.vmem [#allocation2], %s2160
        %2162 = vst [vmem:[%s2161] sm:$0xff] %v2159
        %p2163 = scmp.eq.s32.totalorder %s37, 9
        // Predicated region
        $region93: #{hifusion_apply.1} parent=55 // pred_check
          %p2164 = pneg %p2163
        $region94: #{hifusion_apply.1} parent=55 // pred_check_branch
          %2166 = sbr.rel (%p2164) target = $region96
        $region95: #{hifusion_apply.1} parent=55 // pred_region
          %2167 = vst [vmem:[#allocation19] sm:$0xff] %v2159
        $region96: #{hifusion_apply.1} parent=55 // pred_fallthru
          _
        // Predicated region
        $region97: #{hifusion_apply.1} parent=55 // pred_check
          %p2168 = pneg %p269
        $region98: #{hifusion_apply.1} parent=55 // pred_check_branch
          %2170 = sbr.rel (%p2168) target = $region100
        $region99: #{hifusion_apply.1} parent=55 // pred_region
          %s2172 = ssub.s32 128, 128
          %2173 = vsyncadd [#allocation7], %s2172
          %s2175 = sshll.u32 [#allocation19], 4
          %s2176 = int_to_ptr.vmem [resolvable:$true] %s2175
          %2178 = dma.vmem_to_hbm [thread:$0]  %s2176, 128, %s10, [#allocation7]
        $region100: #{hifusion_apply.1} parent=55 // pred_fallthru
          _
        // Predicated region
        $region101: #{hifusion_apply.1} parent=55 // pred_check
          %p2179 = pneg %p269
        $region102: #{hifusion_apply.1} parent=55 // pred_check_branch
          %2181 = sbr.rel (%p2179) target = $region104
        $region103: #{hifusion_apply.1} parent=55 // pred_region
          %2182 = dma.done [#allocation7], 128
        $region104: #{hifusion_apply.1} parent=55 // pred_fallthru
          _
      $region56: #{hifusion_apply.1} parent=5 // pred_fallthru
        _
      %p2183 = scmp.le.s32.totalorder 2, %s32
      // Predicated region
      $region105: #{hifusion_apply.1} parent=5 // pred_check
        %p2184 = pneg %p2183
      $region106: #{hifusion_apply.1} parent=5 // pred_check_branch
        %2186 = sbr.rel (%p2184) target = $region108
      $region107: #{hifusion_apply.1} parent=5 // pred_region
        %s2187 = ssub.s32 %s32, 2
      $region108: #{hifusion_apply.1} parent=5 // pred_fallthru
        _
    $region6: #{hifusion_apply.1} parent=1 // loop_footer
      %s36 = sadd.s32 1, %s32
    $region7: #{hifusion_apply.1} parent=1 // loop_footer_branch
      %31 = sbr.rel target = $region3
    $region8: #{hifusion_apply.1} parent=1 // loop_exit
      _
    %2188 = vsyncpa [#allocation6], 1
    %s2189 = scalar_lea.sflag [#allocation6], 1
    %2190 = vsyncpa %s2189, 1
    %2191 = vsyncpa [#allocation9], 1
    %2192 = vsyncpa [#allocation12], 1
    %s2193 = scalar_lea.sflag [#allocation12], 1
    %2194 = vsyncpa %s2193, 1
    %2195 = vsyncpa [#allocation15], 1
    %s2196 = scalar_lea.sflag [#allocation15], 1
    %2197 = vsyncpa %s2196, 1
    %2198 = vsyncpa [#allocation18], 1
    %s2199 = scalar_lea.sflag [#allocation18], 1
    %2200 = vsyncpa %s2199, 1
    %2201 = vsyncpa [#allocation7], 1
    %s2202 = scalar_lea.sflag [#allocation7], 1
    %2203 = vsyncpa %s2202, 1

</llo_original>
